<compile_context>
chip_gen: v7x
topology: tpu7x:2x2x1
jax: 0.10.0
libtpu: 0.0.40
codegen_flags: <defaults>
</compile_context>

<pallas_src>
import jax
import jax.numpy as jnp
import numpy as np
from jax.experimental import pallas as pl
from jax.experimental.pallas import tpu as pltpu


def _round_up(v, m):
    return -(-v // m) * m


# --------------------------------------------------------------------------- #
# Kernel
# --------------------------------------------------------------------------- #
def make_rga_kernel(dims, wmeta, smeta):
    """dims: static sizes; wmeta/smeta: name -> (row_offset, rows, cols) in the slabs."""
    n, bt, ic, isp = dims["n"], dims["bt"], dims["ic"], dims["isp"]
    f32 = jnp.float32
    bf16 = jnp.bfloat16
    dn_last = (((1,), (1,)), ((), ()))   # contract last dims of both operands

    def kernel(x_ref, wslab_ref, sslab_ref, out_ref):
        relu = lambda v: jnp.maximum(v, 0.0)
        mm = lambda a, b: jnp.dot(a, b, preferred_element_type=f32)

        def wget(name):                           # bf16 matmul weights
            o, r, cc = wmeta[name]
            return wslab_ref[o:o + r, :cc]

        def sget(name):                           # f32 small weights / biases
            o, r, cc = smeta[name]
            return sslab_ref[o:o + r, :cc]

        x = x_ref[0]                              # (C, Bt*N) bf16

        ws_proj = wget("ws_proj")                 # (3*ic, C)
        wggs_l = wget("wggs_l")                   # (isp, N)
        wggs_r = wget("wggs_r")                   # (isp, N)
        wc_proj = wget("wc_proj")                 # (3*isp, N)
        wggc_l = wget("wggc_l")                   # (ic, C)
        wggc_r = wget("wggc_r")                   # (ic, C)

        bs_proj = sget("bs_proj"); bggs = sget("bggs")
        ws1_g = sget("ws1_g"); ws1_j = sget("ws1_j"); bs1 = sget("bs1")
        ws2 = sget("ws2"); bs2 = sget("bs2")
        bc_proj = sget("bc_proj"); bggc = sget("bggc")
        wc1_g = sget("wc1_g"); wc1_j = sget("wc1_j"); bc1 = sget("bc1")
        wc2 = sget("wc2"); bc2 = sget("bc2")

        # Fused theta/phi/gx spatial projections over the whole lane-packed slab
        # (bf16 operands on the MXU, f32 accumulation).
        proj_s = relu(mm(ws_proj, x) + bs_proj)                         # (3*ic, Bt*N) f32
        theta_phi = proj_s[0:2 * ic]                                    # theta stacked on phi
        g_xs_mean = jnp.mean(proj_s[2 * ic:3 * ic], axis=0, keepdims=True)  # (1, Bt*N)

        parts = []
        for b in range(bt):                                             # bt is small & static
            lo = b * n
            tp = theta_phi[:, lo:lo + n]                                # (2*ic, N) f32
            th = tp[:ic].astype(bf16)
            ph = tp[ic:].astype(bf16)
            gm = g_xs_mean[:, lo:lo + n]                                # (1, N)
            xb = x[:, lo:lo + n]                                        # (C, N) bf16

            # ---- spatial attention: Gram reassociated away + fused joint ----
            #   wggs_l @ Gs^T == (wggs_l @ phi^T) @ theta
            #   wggs_r @ Gs   == (wggs_r @ theta^T) @ phi
            # combined as [a_l | a_r] @ [theta; phi] (one MXU push, K = 2*ic).
            a_l = jax.lax.dot_general(wggs_l, ph, dn_last, preferred_element_type=f32)
            a_r = jax.lax.dot_general(wggs_r, th, dn_last, preferred_element_type=f32)
            a_lr = jnp.concatenate([a_l, a_r], axis=1)                  # (isp, 2*ic)
            gs_joint = relu(mm(a_lr, tp) + bggs)                        # (isp, N)
            # K=1 conv on the pooled row -> VPU broadcast product (no MXU push).
            h1 = relu(ws1_g * gm + mm(ws1_j, gs_joint) + bs1)           # (ns1, N)
            w_ys = mm(ws2, h1) + bs2                                    # (1, N)
            xs_b = jax.nn.sigmoid(w_ys) * xb.astype(f32)                # (C, N) f32

            # ---- channel attention: no activation transpose (contract lanes) ----
            proj_c = relu(jax.lax.dot_general(wc_proj, xs_b.astype(bf16), dn_last,
                                              preferred_element_type=f32)
                          + bc_proj)                                    # (3*isp, C) f32
            thc_phc = proj_c[0:2 * isp]
            g_xc_mean = jnp.mean(proj_c[2 * isp:3 * isp], axis=0, keepdims=True)  # (1, C)
            thc = thc_phc[:isp].astype(bf16)
            phc = thc_phc[isp:].astype(bf16)
            a_cl = jax.lax.dot_general(wggc_l, phc, dn_last, preferred_element_type=f32)
            a_cr = jax.lax.dot_general(wggc_r, thc, dn_last, preferred_element_type=f32)
            a_clr = jnp.concatenate([a_cl, a_cr], axis=1)               # (ic, 2*isp)
            gc_joint = relu(mm(a_clr, thc_phc) + bggc)                  # (ic, C)
            h1c = relu(wc1_g * g_xc_mean + mm(wc1_j, gc_joint) + bc1)   # (nc1, C)
            # Final conv produced directly in (C, 1) orientation (no transpose).
            w_yc_t = jax.lax.dot_general(h1c, wc2, (((0,), (1,)), ((), ())),
                                         preferred_element_type=f32) + bc2   # (C, 1)
            parts.append(jax.nn.sigmoid(w_yc_t) * xs_b)                 # (C, N) f32

        # Single full-width, lane-dense store of the whole output block.
        out_ref[0] = parts[0] if bt == 1 else jnp.concatenate(parts, axis=1)

    return kernel


# --------------------------------------------------------------------------- #
# Parameter construction (conv + eval-mode BN folded into W_eff, b_eff)
# --------------------------------------------------------------------------- #
def make_params(key, c, n, cha_ratio=8, spa_ratio=8, down_ratio=8, eps=1e-5):
    ic = c // cha_ratio
    is_ = n // spa_ratio
    ns1 = (1 + is_) // down_ratio
    nc1 = (1 + ic) // down_ratio
    assert ns1 >= 1 and nc1 >= 1, "pick shapes so down-ratio convs are non-empty"

    keys = iter(jax.random.split(key, 128))

    def conv_bn(out_c, in_c):
        w = 0.1 * jax.random.normal(next(keys), (out_c, in_c), jnp.float32)
        gamma = 1.0 + 0.1 * jax.random.normal(next(keys), (out_c,), jnp.float32)
        beta = 0.1 * jax.random.normal(next(keys), (out_c,), jnp.float32)
        mean = 0.1 * jax.random.normal(next(keys), (out_c,), jnp.float32)
        var = 1.0 + 0.1 * jnp.abs(jax.random.normal(next(keys), (out_c,), jnp.float32))
        s = gamma / jnp.sqrt(var + eps)
        w_eff = w * s[:, None]
        b_eff = (beta - mean * s)[:, None]  # (out_c, 1)
        return w_eff, b_eff

    return {
        "theta_s": conv_bn(ic, c),
        "phi_s": conv_bn(ic, c),
        "gg_s": conv_bn(is_, 2 * n),
        "gx_s": conv_bn(ic, c),
        "ws1": conv_bn(ns1, 1 + is_),
        "ws2": conv_bn(1, ns1),
        "theta_c": conv_bn(is_, n),
        "phi_c": conv_bn(is_, n),
        "gg_c": conv_bn(ic, 2 * c),
        "gx_c": conv_bn(is_, n),
        "wc1": conv_bn(nc1, 1 + ic),
        "wc2": conv_bn(1, nc1),
    }


# --------------------------------------------------------------------------- #
# Wrapper
# --------------------------------------------------------------------------- #
def _pick_bt(n, b):
    """Batch-packing factor: lanes a multiple of 128; keep >= 4 grid steps."""
    bt = 1
    while (bt * n) % 128 != 0:
        bt += 1
        if bt > 128:
            return 1
    # Widen lanes further only while >= 4 grid steps remain (2 per TC on v7x)
    # and the lane width stays modest.
    while b % (bt * 2) == 0 and b // (bt * 2) >= 4 and (bt * 2) * n <= 2048:
        bt *= 2
    return bt


def _pack_slab(entries, dtype):
    """Pack named 2-D arrays row-wise into one slab (rows padded to x8, lanes
    padded to a common x128 width).  Returns (slab, meta) with
    meta[name] = (row_offset, rows, cols) for static in-kernel slicing."""
    width = _round_up(max(a.shape[1] for _, a in entries), 128)
    meta, parts, off = {}, [], 0
    for name, a in entries:
        rp = _round_up(a.shape[0], 8)
        meta[name] = (off, a.shape[0], a.shape[1])
        parts.append(jnp.pad(a.astype(dtype),
                             ((0, rp - a.shape[0]), (0, width - a.shape[1]))))
        off += rp
    return jnp.concatenate(parts, axis=0), meta


@jax.jit
def rga_pallas(x, params):
    b, c, h, w = x.shape
    n = h * w
    ic = params["theta_s"][0].shape[0]    # inter_channel
    isp = params["theta_c"][0].shape[0]   # inter_spatial

    bt = _pick_bt(n, b)
    b_pad = _round_up(b, bt)
    groups = b_pad // bt

    # Activations travel in bf16 (halves HBM/DMA traffic); everything is
    # accumulated / post-processed in f32 inside the kernel.
    x2 = x.reshape(b, c, n).astype(jnp.bfloat16)
    if b_pad != b:
        x2 = jnp.pad(x2, ((0, b_pad - b), (0, 0), (0, 0)))
    if bt == 1:
        xp = x2                                   # no pack/unpack round trip
    else:
        xp = (x2.reshape(groups, bt, c, n)
                 .transpose(0, 2, 1, 3)
                 .reshape(groups, c, bt * n))

    (wts, bts) = params["theta_s"]
    (wps, bps) = params["phi_s"]
    (wggs, bggs) = params["gg_s"]
    (wgxs, bgxs) = params["gx_s"]
    (ws1, bs1) = params["ws1"]
    (ws2, bs2) = params["ws2"]
    (wtc, btc) = params["theta_c"]
    (wpc, bpc) = params["phi_c"]
    (wggc, bggc) = params["gg_c"]
    (wgxc, bgxc) = params["gx_c"]
    (wc1, bc1) = params["wc1"]
    (wc2, bc2) = params["wc2"]

    # Fuse theta/phi/gx into stacked projections (one tall MXU operand each).
    ws_proj = jnp.concatenate([wts, wps, wgxs], axis=0)   # (3*ic, C)
    bs_proj = jnp.concatenate([bts, bps, bgxs], axis=0)   # (3*ic, 1)
    wc_proj = jnp.concatenate([wtc, wpc, wgxc], axis=0)   # (3*isp, N)
    bc_proj = jnp.concatenate([btc, bpc, bgxc], axis=0)   # (3*isp, 1)

    # Consolidate all weights into 2 grid-invariant slabs (2 DMAs instead of ~20).
    wslab, wmeta = _pack_slab([
        ("ws_proj", ws_proj),
        ("wggs_l", wggs[:, :n]), ("wggs_r", wggs[:, n:]),
        ("wc_proj", wc_proj),
        ("wggc_l", wggc[:, :c]), ("wggc_r", wggc[:, c:]),
    ], jnp.bfloat16)
    sslab, smeta = _pack_slab([
        ("bs_proj", bs_proj), ("bggs", bggs),
        ("ws1_g", ws1[:, :1]), ("ws1_j", ws1[:, 1:]), ("bs1", bs1),
        ("ws2", ws2), ("bs2", bs2),
        ("bc_proj", bc_proj), ("bggc", bggc),
        ("wc1_g", wc1[:, :1]), ("wc1_j", wc1[:, 1:]), ("bc1", bc1),
        ("wc2", wc2), ("bc2", bc2),
    ], jnp.float32)

    dims = dict(n=n, bt=bt, ic=ic, isp=isp)
    kernel = make_rga_kernel(dims, wmeta, smeta)

    out = pl.pallas_call(
        kernel,
        out_shape=jax.ShapeDtypeStruct((groups, c, bt * n), jnp.float32),
        grid=(groups,),
        in_specs=[
            pl.BlockSpec((1, c, bt * n), lambda i: (i, 0, 0)),
            # Grid-invariant weight slabs: constant block index -> fetched once.
            pl.BlockSpec(wslab.shape, lambda i: (0, 0)),
            pl.BlockSpec(sslab.shape, lambda i: (0, 0)),
        ],
        out_specs=pl.BlockSpec((1, c, bt * n), lambda i: (i, 0, 0)),
        compiler_params=pltpu.CompilerParams(
            dimension_semantics=("parallel",),
            vmem_limit_bytes=64 * 1024 * 1024),
    )(xp, wslab, sslab)

    if bt != 1:
        out = (out.reshape(groups, c, bt, n)
                  .transpose(0, 2, 1, 3)
                  .reshape(b_pad, c, n))
    return out[:b].reshape(b, c, h, w)


# --------------------------------------------------------------------------- #
# Pure-JAX reference (f32) of the same forward pass
# --------------------------------------------------------------------------- #
def rga_reference(x, params):
    b, c, h, w = x.shape
    n = h * w
    x2 = x.reshape(b, c, n).astype(jnp.float32)
    (wts, bts) = params["theta_s"]
    (wps, bps) = params["phi_s"]
    (wggs, bggs) = params["gg_s"]
    (wgxs, bgxs) = params["gx_s"]
    (ws1, bs1) = params["ws1"]
    (ws2, bs2) = params["ws2"]
    (wtc, btc) = params["theta_c"]
    (wpc, bpc) = params["phi_c"]
    (wggc, bggc) = params["gg_c"]
    (wgxc, bgxc) = params["gx_c"]
    (wc1, bc1) = params["wc1"]
    (wc2, bc2) = params["wc2"]

    def one(xb):
        relu = lambda v: jnp.maximum(v, 0.0)
        theta = relu(wts @ xb + bts)
        phi = relu(wps @ xb + bps)
        Gs = theta.T @ phi
        Gs_joint = relu(wggs[:, :n] @ Gs.T + wggs[:, n:] @ Gs + bggs)
        gxs = relu(wgxs @ xb + bgxs)
        ys = jnp.concatenate([jnp.mean(gxs, axis=0, keepdims=True), Gs_joint], 0)
        W_ys = ws2 @ relu(ws1 @ ys + bs1) + bs2
        xs = jax.nn.sigmoid(W_ys) * xb

        xt = xs.T
        thc = relu(wtc @ xt + btc)
        phc = relu(wpc @ xt + bpc)
        Gc = thc.T @ phc
        Gc_joint = relu(wggc[:, :c] @ Gc.T + wggc[:, c:] @ Gc + bggc)
        gxc = relu(wgxc @ xt + bgxc)
        yc = jnp.concatenate([jnp.mean(gxc, axis=0, keepdims=True), Gc_joint], 0)
        W_yc = wc2 @ relu(wc1 @ yc + bc1) + bc2
        return jax.nn.sigmoid(W_yc).T * xs

    return jax.vmap(one)(x2).reshape(b, c, h, w)


if __name__ == "__main__":
    key = jax.random.PRNGKey(0)
    kx, kp = jax.random.split(key)

    # in_channel = 64, in_spatial = 8*8 = 64 -> inter_channel = inter_spatial = 8,
    # num_channel_s = num_channel_c = 9 -> down-ratio convs have 1 output channel.
    # batch = 8 with Bt = 2 -> 128-lane-dense blocks and a 4-step grid
    # (>= 2 steps per TensorCore on v7x, pipeline overlap on all generations).
    b, c, h, w = 8, 64, 8, 8
    x = jax.random.normal(kx, (b, c, h, w), jnp.float32)
    params = make_params(kp, c, h * w)

    out = rga_pallas(x, params)
    jax.block_until_ready(out)

    ref = rga_reference(x, params)
    assert out.shape == x.shape
    out_np, ref_np = np.asarray(out), np.asarray(ref)
    # bf16 matmul operands -> loose elementwise tolerance; the mean-error check
    # keeps the test meaningful (a real bug gives O(1) errors).
    np.testing.assert_allclose(out_np, ref_np, rtol=1e-1, atol=1e-1)
    assert float(np.mean(np.abs(out_np - ref_np))) < 2e-2

    print("KERNEL_OK")
</pallas_src>

<mosaic_0001>
module attributes {stable_mosaic.version = 11 : i64} {
  func.func @kernel(%arg0: i32, %arg1: memref<1x64x128xbf16, #tpu.memory_space<vmem>>, %arg2: memref<80x128xbf16, #tpu.memory_space<vmem>>, %arg3: memref<144x128xf32, #tpu.memory_space<vmem>>, %arg4: memref<1x64x128xf32, #tpu.memory_space<vmem>>) attributes {dimension_semantics = [#tpu.dimension_semantics<parallel>], iteration_bounds = array<i64: 4>, scalar_prefetch = 0 : i64, scratch_operands = 0 : i64, tpu.core_type = #tpu.core_type<tc>, window_params = [{transform_indices = @transform_0, window_bounds = array<i64: 1, 64, 128>}, {pipeline_mode = #tpu.pipeline_mode<synchronous>, transform_indices = @transform_1, window_bounds = array<i64: 80, 128>}, {pipeline_mode = #tpu.pipeline_mode<synchronous>, transform_indices = @transform_2, window_bounds = array<i64: 144, 128>}, {transform_indices = @transform_3, window_bounds = array<i64: 1, 64, 128>}]} {
    %c0 = arith.constant 0 : index
    %c0_0 = arith.constant 0 : index
    %c0_1 = arith.constant 0 : index
    %0 = vector.load %arg1[%c0, %c0_0, %c0_1] : memref<1x64x128xbf16, #tpu.memory_space<vmem>>, vector<1x64x128xbf16>
    %1 = vector.shape_cast %0 : vector<1x64x128xbf16> to vector<64x128xbf16>
    %c0_2 = arith.constant 0 : index
    %c0_3 = arith.constant 0 : index
    %2 = vector.load %arg2[%c0_2, %c0_3] : memref<80x128xbf16, #tpu.memory_space<vmem>>, vector<24x64xbf16>
    %c24 = arith.constant 24 : index
    %c0_4 = arith.constant 0 : index
    %3 = vector.load %arg2[%c24, %c0_4] : memref<80x128xbf16, #tpu.memory_space<vmem>>, vector<8x64xbf16>
    %c32 = arith.constant 32 : index
    %c0_5 = arith.constant 0 : index
    %4 = vector.load %arg2[%c32, %c0_5] : memref<80x128xbf16, #tpu.memory_space<vmem>>, vector<8x64xbf16>
    %c40 = arith.constant 40 : index
    %c0_6 = arith.constant 0 : index
    %5 = vector.load %arg2[%c40, %c0_6] : memref<80x128xbf16, #tpu.memory_space<vmem>>, vector<24x64xbf16>
    %c64 = arith.constant 64 : index
    %c0_7 = arith.constant 0 : index
    %6 = vector.load %arg2[%c64, %c0_7] : memref<80x128xbf16, #tpu.memory_space<vmem>>, vector<8x64xbf16>
    %c72 = arith.constant 72 : index
    %c0_8 = arith.constant 0 : index
    %7 = vector.load %arg2[%c72, %c0_8] : memref<80x128xbf16, #tpu.memory_space<vmem>>, vector<8x64xbf16>
    %c0_9 = arith.constant 0 : index
    %c0_10 = arith.constant 0 : index
    %8 = vector.load %arg3[%c0_9, %c0_10] : memref<144x128xf32, #tpu.memory_space<vmem>>, vector<24x1xf32>
    %c24_11 = arith.constant 24 : index
    %c0_12 = arith.constant 0 : index
    %9 = vector.load %arg3[%c24_11, %c0_12] : memref<144x128xf32, #tpu.memory_space<vmem>>, vector<8x1xf32>
    %c32_13 = arith.constant 32 : index
    %c0_14 = arith.constant 0 : index
    %10 = vector.load %arg3[%c32_13, %c0_14] : memref<144x128xf32, #tpu.memory_space<vmem>>, vector<1x1xf32>
    %c40_15 = arith.constant 40 : index
    %c0_16 = arith.constant 0 : index
    %11 = vector.load %arg3[%c40_15, %c0_16] : memref<144x128xf32, #tpu.memory_space<vmem>>, vector<1x8xf32>
    %c48 = arith.constant 48 : index
    %c0_17 = arith.constant 0 : index
    %12 = vector.load %arg3[%c48, %c0_17] : memref<144x128xf32, #tpu.memory_space<vmem>>, vector<1x1xf32>
    %c56 = arith.constant 56 : index
    %c0_18 = arith.constant 0 : index
    %13 = vector.load %arg3[%c56, %c0_18] : memref<144x128xf32, #tpu.memory_space<vmem>>, vector<1x1xf32>
    %c64_19 = arith.constant 64 : index
    %c0_20 = arith.constant 0 : index
    %14 = vector.load %arg3[%c64_19, %c0_20] : memref<144x128xf32, #tpu.memory_space<vmem>>, vector<1x1xf32>
    %c72_21 = arith.constant 72 : index
    %c0_22 = arith.constant 0 : index
    %15 = vector.load %arg3[%c72_21, %c0_22] : memref<144x128xf32, #tpu.memory_space<vmem>>, vector<24x1xf32>
    %c96 = arith.constant 96 : index
    %c0_23 = arith.constant 0 : index
    %16 = vector.load %arg3[%c96, %c0_23] : memref<144x128xf32, #tpu.memory_space<vmem>>, vector<8x1xf32>
    %c104 = arith.constant 104 : index
    %c0_24 = arith.constant 0 : index
    %17 = vector.load %arg3[%c104, %c0_24] : memref<144x128xf32, #tpu.memory_space<vmem>>, vector<1x1xf32>
    %c112 = arith.constant 112 : index
    %c0_25 = arith.constant 0 : index
    %18 = vector.load %arg3[%c112, %c0_25] : memref<144x128xf32, #tpu.memory_space<vmem>>, vector<1x8xf32>
    %c120 = arith.constant 120 : index
    %c0_26 = arith.constant 0 : index
    %19 = vector.load %arg3[%c120, %c0_26] : memref<144x128xf32, #tpu.memory_space<vmem>>, vector<1x1xf32>
    %c128 = arith.constant 128 : index
    %c0_27 = arith.constant 0 : index
    %20 = vector.load %arg3[%c128, %c0_27] : memref<144x128xf32, #tpu.memory_space<vmem>>, vector<1x1xf32>
    %c136 = arith.constant 136 : index
    %c0_28 = arith.constant 0 : index
    %21 = vector.load %arg3[%c136, %c0_28] : memref<144x128xf32, #tpu.memory_space<vmem>>, vector<1x1xf32>
    %cst = arith.constant dense<0.000000e+00> : vector<24x128xf32>
    %22 = tpu.matmul %2, %1, %cst {dimension_numbers = #tpu.dot_dimension_numbers<[1], [0], [0], [1], [0, 0, 1, 1], [], []>} : vector<24x64xbf16>, vector<64x128xbf16>, vector<24x128xf32> -> vector<24x128xf32>
    %23 = vector.broadcast %8 : vector<24x1xf32> to vector<24x128xf32>
    %24 = arith.addf %22, %23 : vector<24x128xf32>
    %cst_29 = arith.constant 0.000000e+00 : f32
    %25 = vector.broadcast %cst_29 : f32 to vector<24x128xf32>
    %26 = arith.maximumf %24, %25 : vector<24x128xf32>
    %27 = vector.extract_strided_slice %26 {offsets = [0, 0], sizes = [16, 128], strides = [1, 1]} : vector<24x128xf32> to vector<16x128xf32>
    %28 = vector.extract_strided_slice %26 {offsets = [16, 0], sizes = [8, 128], strides = [1, 1]} : vector<24x128xf32> to vector<8x128xf32>
    %cst_30 = arith.constant dense<0.000000e+00> : vector<128xf32>
    %29 = vector.multi_reduction <add>, %28, %cst_30 [0] : vector<8x128xf32> to vector<128xf32>
    %30 = vector.shape_cast %29 : vector<128xf32> to vector<1x128xf32>
    %cst_31 = arith.constant 8.000000e+00 : f32
    %31 = vector.broadcast %cst_31 : f32 to vector<1x128xf32>
    %32 = arith.divf %30, %31 : vector<1x128xf32>
    %33 = vector.extract_strided_slice %27 {offsets = [0, 0], sizes = [16, 64], strides = [1, 1]} : vector<16x128xf32> to vector<16x64xf32>
    %34 = vector.extract_strided_slice %33 {offsets = [0, 0], sizes = [8, 64], strides = [1, 1]} : vector<16x64xf32> to vector<8x64xf32>
    %35 = arith.truncf %34 : vector<8x64xf32> to vector<8x64xbf16>
    %36 = vector.extract_strided_slice %33 {offsets = [8, 0], sizes = [8, 64], strides = [1, 1]} : vector<16x64xf32> to vector<8x64xf32>
    %37 = arith.truncf %36 : vector<8x64xf32> to vector<8x64xbf16>
    %38 = vector.extract_strided_slice %32 {offsets = [0, 0], sizes = [1, 64], strides = [1, 1]} : vector<1x128xf32> to vector<1x64xf32>
    %39 = vector.extract_strided_slice %1 {offsets = [0, 0], sizes = [64, 64], strides = [1, 1]} : vector<64x128xbf16> to vector<64x64xbf16>
    %cst_32 = arith.constant dense<0.000000e+00> : vector<8x8xf32>
    %40 = tpu.matmul %3, %37, %cst_32 {dimension_numbers = #tpu.dot_dimension_numbers<[1], [1], [0], [0], [0, 0, 1, 0], [], []>} : vector<8x64xbf16>, vector<8x64xbf16>, vector<8x8xf32> -> vector<8x8xf32>
    %cst_33 = arith.constant dense<0.000000e+00> : vector<8x8xf32>
    %41 = tpu.matmul %4, %35, %cst_33 {dimension_numbers = #tpu.dot_dimension_numbers<[1], [1], [0], [0], [0, 0, 1, 0], [], []>} : vector<8x64xbf16>, vector<8x64xbf16>, vector<8x8xf32> -> vector<8x8xf32>
    %42 = tpu.concatenate %40, %41 in 1 : vector<8x8xf32>, vector<8x8xf32> -> vector<8x16xf32>
    %cst_34 = arith.constant dense<0.000000e+00> : vector<8x64xf32>
    %43 = tpu.matmul %42, %33, %cst_34 {dimension_numbers = #tpu.dot_dimension_numbers<[1], [0], [0], [1], [0, 0, 1, 1], [], []>} : vector<8x16xf32>, vector<16x64xf32>, vector<8x64xf32> -> vector<8x64xf32>
    %44 = vector.broadcast %9 : vector<8x1xf32> to vector<8x64xf32>
    %45 = arith.addf %43, %44 : vector<8x64xf32>
    %cst_35 = arith.constant 0.000000e+00 : f32
    %46 = vector.broadcast %cst_35 : f32 to vector<8x64xf32>
    %47 = arith.maximumf %45, %46 : vector<8x64xf32>
    %48 = vector.broadcast %10 : vector<1x1xf32> to vector<1x64xf32>
    %49 = arith.mulf %48, %38 : vector<1x64xf32>
    %cst_36 = arith.constant dense<0.000000e+00> : vector<1x64xf32>
    %50 = tpu.matmul %11, %47, %cst_36 {dimension_numbers = #tpu.dot_dimension_numbers<[1], [0], [0], [1], [0, 0, 1, 1], [], []>} : vector<1x8xf32>, vector<8x64xf32>, vector<1x64xf32> -> vector<1x64xf32>
    %51 = arith.addf %49, %50 : vector<1x64xf32>
    %52 = vector.broadcast %12 : vector<1x1xf32> to vector<1x64xf32>
    %53 = arith.addf %51, %52 : vector<1x64xf32>
    %cst_37 = arith.constant 0.000000e+00 : f32
    %54 = vector.broadcast %cst_37 : f32 to vector<1x64xf32>
    %55 = arith.maximumf %53, %54 : vector<1x64xf32>
    %cst_38 = arith.constant dense<0.000000e+00> : vector<1x64xf32>
    %56 = tpu.matmul %13, %55, %cst_38 {dimension_numbers = #tpu.dot_dimension_numbers<[1], [0], [0], [1], [0, 0, 1, 1], [], []>} : vector<1x1xf32>, vector<1x64xf32>, vector<1x64xf32> -> vector<1x64xf32>
    %57 = vector.broadcast %14 : vector<1x1xf32> to vector<1x64xf32>
    %58 = arith.addf %56, %57 : vector<1x64xf32>
    %59 = arith.negf %58 : vector<1x64xf32>
    %60 = math.exp %59 : vector<1x64xf32>
    %cst_39 = arith.constant 1.000000e+00 : f32
    %61 = vector.broadcast %cst_39 : f32 to vector<1x64xf32>
    %62 = arith.addf %61, %60 : vector<1x64xf32>
    %63 = arith.divf %61, %62 : vector<1x64xf32>
    %64 = arith.extf %39 : vector<64x64xbf16> to vector<64x64xf32>
    %65 = vector.broadcast %63 : vector<1x64xf32> to vector<64x64xf32>
    %66 = arith.mulf %65, %64 : vector<64x64xf32>
    %67 = arith.truncf %66 : vector<64x64xf32> to vector<64x64xbf16>
    %cst_40 = arith.constant dense<0.000000e+00> : vector<24x64xf32>
    %68 = tpu.matmul %5, %67, %cst_40 {dimension_numbers = #tpu.dot_dimension_numbers<[1], [1], [0], [0], [0, 0, 1, 0], [], []>} : vector<24x64xbf16>, vector<64x64xbf16>, vector<24x64xf32> -> vector<24x64xf32>
    %69 = vector.broadcast %15 : vector<24x1xf32> to vector<24x64xf32>
    %70 = arith.addf %68, %69 : vector<24x64xf32>
    %cst_41 = arith.constant 0.000000e+00 : f32
    %71 = vector.broadcast %cst_41 : f32 to vector<24x64xf32>
    %72 = arith.maximumf %70, %71 : vector<24x64xf32>
    %73 = vector.extract_strided_slice %72 {offsets = [0, 0], sizes = [16, 64], strides = [1, 1]} : vector<24x64xf32> to vector<16x64xf32>
    %74 = vector.extract_strided_slice %72 {offsets = [16, 0], sizes = [8, 64], strides = [1, 1]} : vector<24x64xf32> to vector<8x64xf32>
    %cst_42 = arith.constant dense<0.000000e+00> : vector<64xf32>
    %75 = vector.multi_reduction <add>, %74, %cst_42 [0] : vector<8x64xf32> to vector<64xf32>
    %76 = vector.shape_cast %75 : vector<64xf32> to vector<1x64xf32>
    %cst_43 = arith.constant 8.000000e+00 : f32
    %77 = vector.broadcast %cst_43 : f32 to vector<1x64xf32>
    %78 = arith.divf %76, %77 : vector<1x64xf32>
    %79 = vector.extract_strided_slice %73 {offsets = [0, 0], sizes = [8, 64], strides = [1, 1]} : vector<16x64xf32> to vector<8x64xf32>
    %80 = arith.truncf %79 : vector<8x64xf32> to vector<8x64xbf16>
    %81 = vector.extract_strided_slice %73 {offsets = [8, 0], sizes = [8, 64], strides = [1, 1]} : vector<16x64xf32> to vector<8x64xf32>
    %82 = arith.truncf %81 : vector<8x64xf32> to vector<8x64xbf16>
    %cst_44 = arith.constant dense<0.000000e+00> : vector<8x8xf32>
    %83 = tpu.matmul %6, %82, %cst_44 {dimension_numbers = #tpu.dot_dimension_numbers<[1], [1], [0], [0], [0, 0, 1, 0], [], []>} : vector<8x64xbf16>, vector<8x64xbf16>, vector<8x8xf32> -> vector<8x8xf32>
    %cst_45 = arith.constant dense<0.000000e+00> : vector<8x8xf32>
    %84 = tpu.matmul %7, %80, %cst_45 {dimension_numbers = #tpu.dot_dimension_numbers<[1], [1], [0], [0], [0, 0, 1, 0], [], []>} : vector<8x64xbf16>, vector<8x64xbf16>, vector<8x8xf32> -> vector<8x8xf32>
    %85 = tpu.concatenate %83, %84 in 1 : vector<8x8xf32>, vector<8x8xf32> -> vector<8x16xf32>
    %cst_46 = arith.constant dense<0.000000e+00> : vector<8x64xf32>
    %86 = tpu.matmul %85, %73, %cst_46 {dimension_numbers = #tpu.dot_dimension_numbers<[1], [0], [0], [1], [0, 0, 1, 1], [], []>} : vector<8x16xf32>, vector<16x64xf32>, vector<8x64xf32> -> vector<8x64xf32>
    %87 = vector.broadcast %16 : vector<8x1xf32> to vector<8x64xf32>
    %88 = arith.addf %86, %87 : vector<8x64xf32>
    %cst_47 = arith.constant 0.000000e+00 : f32
    %89 = vector.broadcast %cst_47 : f32 to vector<8x64xf32>
    %90 = arith.maximumf %88, %89 : vector<8x64xf32>
    %91 = vector.broadcast %17 : vector<1x1xf32> to vector<1x64xf32>
    %92 = arith.mulf %91, %78 : vector<1x64xf32>
    %cst_48 = arith.constant dense<0.000000e+00> : vector<1x64xf32>
    %93 = tpu.matmul %18, %90, %cst_48 {dimension_numbers = #tpu.dot_dimension_numbers<[1], [0], [0], [1], [0, 0, 1, 1], [], []>} : vector<1x8xf32>, vector<8x64xf32>, vector<1x64xf32> -> vector<1x64xf32>
    %94 = arith.addf %92, %93 : vector<1x64xf32>
    %95 = vector.broadcast %19 : vector<1x1xf32> to vector<1x64xf32>
    %96 = arith.addf %94, %95 : vector<1x64xf32>
    %cst_49 = arith.constant 0.000000e+00 : f32
    %97 = vector.broadcast %cst_49 : f32 to vector<1x64xf32>
    %98 = arith.maximumf %96, %97 : vector<1x64xf32>
    %cst_50 = arith.constant dense<0.000000e+00> : vector<64x1xf32>
    %99 = tpu.matmul %98, %20, %cst_50 {dimension_numbers = #tpu.dot_dimension_numbers<[0], [1], [1], [0], [0, 1, 1, 0], [], []>} : vector<1x64xf32>, vector<1x1xf32>, vector<64x1xf32> -> vector<64x1xf32>
    %100 = vector.broadcast %21 : vector<1x1xf32> to vector<64x1xf32>
    %101 = arith.addf %99, %100 : vector<64x1xf32>
    %102 = arith.negf %101 : vector<64x1xf32>
    %103 = math.exp %102 : vector<64x1xf32>
    %cst_51 = arith.constant 1.000000e+00 : f32
    %104 = vector.broadcast %cst_51 : f32 to vector<64x1xf32>
    %105 = arith.addf %104, %103 : vector<64x1xf32>
    %106 = arith.divf %104, %105 : vector<64x1xf32>
    %107 = vector.broadcast %106 : vector<64x1xf32> to vector<64x64xf32>
    %108 = arith.mulf %107, %66 : vector<64x64xf32>
    %109 = vector.extract_strided_slice %27 {offsets = [0, 64], sizes = [16, 64], strides = [1, 1]} : vector<16x128xf32> to vector<16x64xf32>
    %110 = vector.extract_strided_slice %109 {offsets = [0, 0], sizes = [8, 64], strides = [1, 1]} : vector<16x64xf32> to vector<8x64xf32>
    %111 = arith.truncf %110 : vector<8x64xf32> to vector<8x64xbf16>
    %112 = vector.extract_strided_slice %109 {offsets = [8, 0], sizes = [8, 64], strides = [1, 1]} : vector<16x64xf32> to vector<8x64xf32>
    %113 = arith.truncf %112 : vector<8x64xf32> to vector<8x64xbf16>
    %114 = vector.extract_strided_slice %32 {offsets = [0, 64], sizes = [1, 64], strides = [1, 1]} : vector<1x128xf32> to vector<1x64xf32>
    %115 = vector.extract_strided_slice %1 {offsets = [0, 64], sizes = [64, 64], strides = [1, 1]} : vector<64x128xbf16> to vector<64x64xbf16>
    %cst_52 = arith.constant dense<0.000000e+00> : vector<8x8xf32>
    %116 = tpu.matmul %3, %113, %cst_52 {dimension_numbers = #tpu.dot_dimension_numbers<[1], [1], [0], [0], [0, 0, 1, 0], [], []>} : vector<8x64xbf16>, vector<8x64xbf16>, vector<8x8xf32> -> vector<8x8xf32>
    %cst_53 = arith.constant dense<0.000000e+00> : vector<8x8xf32>
    %117 = tpu.matmul %4, %111, %cst_53 {dimension_numbers = #tpu.dot_dimension_numbers<[1], [1], [0], [0], [0, 0, 1, 0], [], []>} : vector<8x64xbf16>, vector<8x64xbf16>, vector<8x8xf32> -> vector<8x8xf32>
    %118 = tpu.concatenate %116, %117 in 1 : vector<8x8xf32>, vector<8x8xf32> -> vector<8x16xf32>
    %cst_54 = arith.constant dense<0.000000e+00> : vector<8x64xf32>
    %119 = tpu.matmul %118, %109, %cst_54 {dimension_numbers = #tpu.dot_dimension_numbers<[1], [0], [0], [1], [0, 0, 1, 1], [], []>} : vector<8x16xf32>, vector<16x64xf32>, vector<8x64xf32> -> vector<8x64xf32>
    %120 = vector.broadcast %9 : vector<8x1xf32> to vector<8x64xf32>
    %121 = arith.addf %119, %120 : vector<8x64xf32>
    %cst_55 = arith.constant 0.000000e+00 : f32
    %122 = vector.broadcast %cst_55 : f32 to vector<8x64xf32>
    %123 = arith.maximumf %121, %122 : vector<8x64xf32>
    %124 = vector.broadcast %10 : vector<1x1xf32> to vector<1x64xf32>
    %125 = arith.mulf %124, %114 : vector<1x64xf32>
    %cst_56 = arith.constant dense<0.000000e+00> : vector<1x64xf32>
    %126 = tpu.matmul %11, %123, %cst_56 {dimension_numbers = #tpu.dot_dimension_numbers<[1], [0], [0], [1], [0, 0, 1, 1], [], []>} : vector<1x8xf32>, vector<8x64xf32>, vector<1x64xf32> -> vector<1x64xf32>
    %127 = arith.addf %125, %126 : vector<1x64xf32>
    %128 = vector.broadcast %12 : vector<1x1xf32> to vector<1x64xf32>
    %129 = arith.addf %127, %128 : vector<1x64xf32>
    %cst_57 = arith.constant 0.000000e+00 : f32
    %130 = vector.broadcast %cst_57 : f32 to vector<1x64xf32>
    %131 = arith.maximumf %129, %130 : vector<1x64xf32>
    %cst_58 = arith.constant dense<0.000000e+00> : vector<1x64xf32>
    %132 = tpu.matmul %13, %131, %cst_58 {dimension_numbers = #tpu.dot_dimension_numbers<[1], [0], [0], [1], [0, 0, 1, 1], [], []>} : vector<1x1xf32>, vector<1x64xf32>, vector<1x64xf32> -> vector<1x64xf32>
    %133 = vector.broadcast %14 : vector<1x1xf32> to vector<1x64xf32>
    %134 = arith.addf %132, %133 : vector<1x64xf32>
    %135 = arith.negf %134 : vector<1x64xf32>
    %136 = math.exp %135 : vector<1x64xf32>
    %cst_59 = arith.constant 1.000000e+00 : f32
    %137 = vector.broadcast %cst_59 : f32 to vector<1x64xf32>
    %138 = arith.addf %137, %136 : vector<1x64xf32>
    %139 = arith.divf %137, %138 : vector<1x64xf32>
    %140 = arith.extf %115 : vector<64x64xbf16> to vector<64x64xf32>
    %141 = vector.broadcast %139 : vector<1x64xf32> to vector<64x64xf32>
    %142 = arith.mulf %141, %140 : vector<64x64xf32>
    %143 = arith.truncf %142 : vector<64x64xf32> to vector<64x64xbf16>
    %cst_60 = arith.constant dense<0.000000e+00> : vector<24x64xf32>
    %144 = tpu.matmul %5, %143, %cst_60 {dimension_numbers = #tpu.dot_dimension_numbers<[1], [1], [0], [0], [0, 0, 1, 0], [], []>} : vector<24x64xbf16>, vector<64x64xbf16>, vector<24x64xf32> -> vector<24x64xf32>
    %145 = vector.broadcast %15 : vector<24x1xf32> to vector<24x64xf32>
    %146 = arith.addf %144, %145 : vector<24x64xf32>
    %cst_61 = arith.constant 0.000000e+00 : f32
    %147 = vector.broadcast %cst_61 : f32 to vector<24x64xf32>
    %148 = arith.maximumf %146, %147 : vector<24x64xf32>
    %149 = vector.extract_strided_slice %148 {offsets = [0, 0], sizes = [16, 64], strides = [1, 1]} : vector<24x64xf32> to vector<16x64xf32>
    %150 = vector.extract_strided_slice %148 {offsets = [16, 0], sizes = [8, 64], strides = [1, 1]} : vector<24x64xf32> to vector<8x64xf32>
    %cst_62 = arith.constant dense<0.000000e+00> : vector<64xf32>
    %151 = vector.multi_reduction <add>, %150, %cst_62 [0] : vector<8x64xf32> to vector<64xf32>
    %152 = vector.shape_cast %151 : vector<64xf32> to vector<1x64xf32>
    %cst_63 = arith.constant 8.000000e+00 : f32
    %153 = vector.broadcast %cst_63 : f32 to vector<1x64xf32>
    %154 = arith.divf %152, %153 : vector<1x64xf32>
    %155 = vector.extract_strided_slice %149 {offsets = [0, 0], sizes = [8, 64], strides = [1, 1]} : vector<16x64xf32> to vector<8x64xf32>
    %156 = arith.truncf %155 : vector<8x64xf32> to vector<8x64xbf16>
    %157 = vector.extract_strided_slice %149 {offsets = [8, 0], sizes = [8, 64], strides = [1, 1]} : vector<16x64xf32> to vector<8x64xf32>
    %158 = arith.truncf %157 : vector<8x64xf32> to vector<8x64xbf16>
    %cst_64 = arith.constant dense<0.000000e+00> : vector<8x8xf32>
    %159 = tpu.matmul %6, %158, %cst_64 {dimension_numbers = #tpu.dot_dimension_numbers<[1], [1], [0], [0], [0, 0, 1, 0], [], []>} : vector<8x64xbf16>, vector<8x64xbf16>, vector<8x8xf32> -> vector<8x8xf32>
    %cst_65 = arith.constant dense<0.000000e+00> : vector<8x8xf32>
    %160 = tpu.matmul %7, %156, %cst_65 {dimension_numbers = #tpu.dot_dimension_numbers<[1], [1], [0], [0], [0, 0, 1, 0], [], []>} : vector<8x64xbf16>, vector<8x64xbf16>, vector<8x8xf32> -> vector<8x8xf32>
    %161 = tpu.concatenate %159, %160 in 1 : vector<8x8xf32>, vector<8x8xf32> -> vector<8x16xf32>
    %cst_66 = arith.constant dense<0.000000e+00> : vector<8x64xf32>
    %162 = tpu.matmul %161, %149, %cst_66 {dimension_numbers = #tpu.dot_dimension_numbers<[1], [0], [0], [1], [0, 0, 1, 1], [], []>} : vector<8x16xf32>, vector<16x64xf32>, vector<8x64xf32> -> vector<8x64xf32>
    %163 = vector.broadcast %16 : vector<8x1xf32> to vector<8x64xf32>
    %164 = arith.addf %162, %163 : vector<8x64xf32>
    %cst_67 = arith.constant 0.000000e+00 : f32
    %165 = vector.broadcast %cst_67 : f32 to vector<8x64xf32>
    %166 = arith.maximumf %164, %165 : vector<8x64xf32>
    %167 = vector.broadcast %17 : vector<1x1xf32> to vector<1x64xf32>
    %168 = arith.mulf %167, %154 : vector<1x64xf32>
    %cst_68 = arith.constant dense<0.000000e+00> : vector<1x64xf32>
    %169 = tpu.matmul %18, %166, %cst_68 {dimension_numbers = #tpu.dot_dimension_numbers<[1], [0], [0], [1], [0, 0, 1, 1], [], []>} : vector<1x8xf32>, vector<8x64xf32>, vector<1x64xf32> -> vector<1x64xf32>
    %170 = arith.addf %168, %169 : vector<1x64xf32>
    %171 = vector.broadcast %19 : vector<1x1xf32> to vector<1x64xf32>
    %172 = arith.addf %170, %171 : vector<1x64xf32>
    %cst_69 = arith.constant 0.000000e+00 : f32
    %173 = vector.broadcast %cst_69 : f32 to vector<1x64xf32>
    %174 = arith.maximumf %172, %173 : vector<1x64xf32>
    %cst_70 = arith.constant dense<0.000000e+00> : vector<64x1xf32>
    %175 = tpu.matmul %174, %20, %cst_70 {dimension_numbers = #tpu.dot_dimension_numbers<[0], [1], [1], [0], [0, 1, 1, 0], [], []>} : vector<1x64xf32>, vector<1x1xf32>, vector<64x1xf32> -> vector<64x1xf32>
    %176 = vector.broadcast %21 : vector<1x1xf32> to vector<64x1xf32>
    %177 = arith.addf %175, %176 : vector<64x1xf32>
    %178 = arith.negf %177 : vector<64x1xf32>
    %179 = math.exp %178 : vector<64x1xf32>
    %cst_71 = arith.constant 1.000000e+00 : f32
    %180 = vector.broadcast %cst_71 : f32 to vector<64x1xf32>
    %181 = arith.addf %180, %179 : vector<64x1xf32>
    %182 = arith.divf %180, %181 : vector<64x1xf32>
    %183 = vector.broadcast %182 : vector<64x1xf32> to vector<64x64xf32>
    %184 = arith.mulf %183, %142 : vector<64x64xf32>
    %185 = tpu.concatenate %108, %184 in 1 : vector<64x64xf32>, vector<64x64xf32> -> vector<64x128xf32>
    %c0_72 = arith.constant 0 : index
    %c0_73 = arith.constant 0 : index
    %c0_74 = arith.constant 0 : index
    %186 = vector.load %arg4[%c0_72, %c0_73, %c0_74] : memref<1x64x128xf32, #tpu.memory_space<vmem>>, vector<1x64x128xf32>
    %187 = vector.shape_cast %186 : vector<1x64x128xf32> to vector<64x128xf32>
    %188 = vector.shape_cast %185 : vector<64x128xf32> to vector<1x64x128xf32>
    tpu.vector_store %arg4[%c0_72, %c0_73, %c0_74], %188 {strides = array<i32>} : memref<1x64x128xf32, #tpu.memory_space<vmem>>, vector<1x64x128xf32>,
    return
  }
  func.func @transform_0(%arg0: i32) -> (i32, i32, i32) {
    %c0_i32 = arith.constant 0 : i32
    %c0_i32_0 = arith.constant 0 : i32
    %c0_i32_1 = arith.constant 0 : i32
    return %arg0, %c0_i32, %c0_i32_0 : i32, i32, i32
  }
  func.func @transform_1(%arg0: i32) -> (i32, i32) {
    %c0_i32 = arith.constant 0 : i32
    %c0_i32_0 = arith.constant 0 : i32
    %c0_i32_1 = arith.constant 0 : i32
    return %c0_i32, %c0_i32_0 : i32, i32
  }
  func.func @transform_2(%arg0: i32) -> (i32, i32) {
    %c0_i32 = arith.constant 0 : i32
    %c0_i32_0 = arith.constant 0 : i32
    %c0_i32_1 = arith.constant 0 : i32
    return %c0_i32, %c0_i32_0 : i32, i32
  }
  func.func @transform_3(%arg0: i32) -> (i32, i32, i32) {
    %c0_i32 = arith.constant 0 : i32
    %c0_i32_0 = arith.constant 0 : i32
    %c0_i32_1 = arith.constant 0 : i32
    return %arg0, %c0_i32, %c0_i32_0 : i32, i32, i32
  }
}

</mosaic_0001>

<llo_original>
// kernel: rga_pallas.1
$region0: #{rga_pallas.1}
  #allocation0 [shape = 'u32[]', space=smem, size = 0x4, offset = 0x4, fixed_abs, tag = 'smem constant byte address 0x4 - core index']
  #allocation1 [shape = 'u32[144,128]{1,0:T(1,128)}', space=vmem, size = 0x12000, scoped, tag = 'internal scratch']
  %s0 = inlined_call_operand.hbm [shape: bf16[4,64,128], index: 0, kind: input, shape index: {}]
  %s1 = inlined_call_operand.hbm [shape: bf16[80,128], index: 1, kind: input, shape index: {}]
  %s2 = inlined_call_operand.hbm [shape: f32[144,128], index: 2, kind: input, shape index: {}]
  %s3 = inlined_call_operand.hbm [shape: f32[4,64,128], index: 3, kind: output, shape index: {}]
  %s4 = sld [smem:[#allocation0]]
  $region57: #{rga_pallas.1} parent=0
    _
  %s6 = ssub.s32 1, %s4
  %s7 = scalar_select 0, %s6, %s4
  $region1: #{rga_pallas.1} parent=0
    #allocation2 [shape = 'u8[32768]{0}', space=vmem, size = 0x8000, scoped, tag = 'input window, operand 0']
    #allocation3 [shape = 's32[2]{0}', space=sflag, size = 0x8, scoped, tag = 'scoped memory for rga_pallas.1']
    #allocation4 [shape = 's32[2]{0}', space=sflag, size = 0x8, scoped, tag = 'scoped memory for rga_pallas.1']
    #allocation5 [shape = 'u8[20480]{0}', space=vmem, size = 0x5000, scoped, tag = 'input window, operand 1, single buffered']
    #allocation6 [shape = 's32[1]{0}', space=sflag, size = 0x4, scoped, tag = 'scoped memory for rga_pallas.1']
    #allocation7 [shape = 'u8[73728]{0}', space=vmem, size = 0x12000, scoped, tag = 'input window, operand 2, single buffered']
    #allocation8 [shape = 'u8[65536]{0}', space=vmem, size = 0x10000, scoped, tag = 'output window, operand 0']
    %8 = vsyncpa [#allocation3], 0
    %s9 = scalar_lea.sflag [#allocation3], 1
    %10 = vsyncpa %s9, 0
    %11 = vsyncpa [#allocation6], 0
    %12 = vsyncpa [#allocation4], 0
    %s13 = scalar_lea.sflag [#allocation4], 1
    %14 = vsyncpa %s13, 0
    loop: start=0, step=1, limit=6
    $region2: #{rga_pallas.1} parent=1 // loop_pre_header
      _
    $region3: #{rga_pallas.1} parent=1 // loop_header
      %s16 = sphi 0, %s20
      %p17 = scmp.ge.s32.totalorder %s16, 6
      %s26 = sphi 0, %s28
      %s29 = sphi 0, %s26
      %s30 = sphi 0, %s29
      %s46 = sphi 0, %s30
      %s50 = sphi 0, %s50
      %s52 = sphi 0, %s50
      %s53 = sphi 0, %s52
      %s67 = sphi 0, %s53
      %s71 = sphi 0, %s71
      %s73 = sphi 0, %s71
      %s74 = sphi 0, %s73
      %s88 = sphi 0, %s74
      %s94 = sphi 0, %s96
      %s97 = sphi 0, %s94
      %s98 = sphi 0, %s97
      %s114 = sphi 0, %s98
    $region4: #{rga_pallas.1} parent=1 // loop_header_branch
      %19 = sbr.rel (%p17) target = $region8
    $region5: #{rga_pallas.1} parent=1 // loop_body
      %s21 = ssub.s32 %s16, 1
      %s22 = ssub.s32 %s16, 2
      %s23 = sadd.s32 %s16, 1
      %s24 = ssub.s32 %s16, %s23
      %p25 = scmp.eq.s32.totalorder %s24, 0
      %s27 = sadd.s32 %s26, 1
      %s28 = scalar_select %p25, %s26, %s27
      %p31 = pneg %p25
      %p32 = scmp.eq.s32.totalorder %s16, 3
      %p33 = por %p31, %p32
      %p34 = scmp.ne.s32.totalorder %s26, %s29
      %p35 = scmp.eq.s32.totalorder %s16, 0
      %p36 = por %p34, %p35
      %p37 = scmp.ne.s32.totalorder %s26, %s29
      %p38 = scmp.eq.s32.totalorder %s21, 3
      %p39 = por %p37, %p38
      %p40 = scmp.ne.s32.totalorder %s29, %s30
      %p41 = scmp.eq.s32.totalorder %s21, 0
      %p42 = por %p40, %p41
      %p43 = scmp.ne.s32.totalorder %s29, %s30
      %p44 = scmp.eq.s32.totalorder %s22, 3
      %p45 = por %p43, %p44
      %p47 = scmp.ne.s32.totalorder %s30, %s46
      %p48 = scmp.eq.s32.totalorder %s22, 0
      %p49 = por %p47, %p48
      %s51 = sadd.s32 %s50, 1
      %p54 = scmp.eq.s32.totalorder %s16, 3
      %p55 = scmp.ne.s32.totalorder %s50, %s52
      %p56 = scmp.eq.s32.totalorder %s16, 0
      %p57 = por %p55, %p56
      %p58 = scmp.ne.s32.totalorder %s50, %s52
      %p59 = scmp.eq.s32.totalorder %s21, 3
      %p60 = por %p58, %p59
      %p61 = scmp.ne.s32.totalorder %s52, %s53
      %p62 = scmp.eq.s32.totalorder %s21, 0
      %p63 = por %p61, %p62
      %p64 = scmp.ne.s32.totalorder %s52, %s53
      %p65 = scmp.eq.s32.totalorder %s22, 3
      %p66 = por %p64, %p65
      %p68 = scmp.ne.s32.totalorder %s53, %s67
      %p69 = scmp.eq.s32.totalorder %s22, 0
      %p70 = por %p68, %p69
      %s72 = sadd.s32 %s71, 1
      %p75 = scmp.eq.s32.totalorder %s16, 3
      %p76 = scmp.ne.s32.totalorder %s71, %s73
      %p77 = scmp.eq.s32.totalorder %s16, 0
      %p78 = por %p76, %p77
      %p79 = scmp.ne.s32.totalorder %s71, %s73
      %p80 = scmp.eq.s32.totalorder %s21, 3
      %p81 = por %p79, %p80
      %p82 = scmp.ne.s32.totalorder %s73, %s74
      %p83 = scmp.eq.s32.totalorder %s21, 0
      %p84 = por %p82, %p83
      %p85 = scmp.ne.s32.totalorder %s73, %s74
      %p86 = scmp.eq.s32.totalorder %s22, 3
      %p87 = por %p85, %p86
      %p89 = scmp.ne.s32.totalorder %s74, %s88
      %p90 = scmp.eq.s32.totalorder %s22, 0
      %p91 = por %p89, %p90
      %s92 = ssub.s32 %s16, %s23
      %p93 = scmp.eq.s32.totalorder %s92, 0
      %s95 = sadd.s32 %s94, 1
      %s96 = scalar_select %p93, %s94, %s95
      %p99 = pneg %p93
      %p100 = scmp.eq.s32.totalorder %s16, 3
      %p101 = por %p99, %p100
      %p102 = scmp.ne.s32.totalorder %s94, %s97
      %p103 = scmp.eq.s32.totalorder %s16, 0
      %p104 = por %p102, %p103
      %p105 = scmp.ne.s32.totalorder %s94, %s97
      %p106 = scmp.eq.s32.totalorder %s21, 3
      %p107 = por %p105, %p106
      %p108 = scmp.ne.s32.totalorder %s97, %s98
      %p109 = scmp.eq.s32.totalorder %s21, 0
      %p110 = por %p108, %p109
      %p111 = scmp.ne.s32.totalorder %s97, %s98
      %p112 = scmp.eq.s32.totalorder %s22, 3
      %p113 = por %p111, %p112
      %p115 = scmp.ne.s32.totalorder %s98, %s114
      %p116 = scmp.eq.s32.totalorder %s22, 0
      %p117 = por %p115, %p116
      %p118 = scmp.le.s32.totalorder 1, %s16
      %p119 = scmp.lt.s32.totalorder %s16, 5
      %p120 = pnand %p118, %p119
      %p121 = pneg %p120
      // Predicated region
      $region9: #{rga_pallas.1} parent=5 // pred_check
        _
      $region10: #{rga_pallas.1} parent=5 // pred_check_branch
        %123 = sbr.rel (%p120) target = $region12
      $region11: #{rga_pallas.1} parent=5 // pred_region
        %s124 = ssub.s32 %s16, 1
        // Predicated region
        $region13: #{rga_pallas.1} parent=11 // pred_check
          %p125 = pneg %p63
        $region14: #{rga_pallas.1} parent=11 // pred_check_branch
          %127 = sbr.rel (%p125) target = $region16
        $region15: #{rga_pallas.1} parent=11 // pred_region
          %s129 = ssub.s32 640, 640
          %130 = vsyncadd [#allocation6], %s129
          %s131 = sshll.u32 [#allocation5], 4
          %s132 = int_to_ptr.vmem [resolvable:$true] %s131
          %137 = dma.hbm_to_vmem [thread:$0]  %s1, 640, %s132, [#allocation6], 64, 64, 4
        $region16: #{rga_pallas.1} parent=11 // pred_fallthru
          _
        // Predicated region
        $region17: #{rga_pallas.1} parent=11 // pred_check
          %p138 = pneg %p84
        $region18: #{rga_pallas.1} parent=11 // pred_check_branch
          %140 = sbr.rel (%p138) target = $region20
        $region19: #{rga_pallas.1} parent=11 // pred_region
          %s142 = ssub.s32 2304, 2304
          %143 = vsyncadd [#allocation6], %s142
          %s144 = sshll.u32 [#allocation7], 4
          %s145 = int_to_ptr.vmem [resolvable:$true] %s144
          %150 = dma.hbm_to_vmem [thread:$0]  %s2, 2304, %s145, [#allocation6], 128, 128, 8
        $region20: #{rga_pallas.1} parent=11 // pred_fallthru
          _
      $region12: #{rga_pallas.1} parent=5 // pred_fallthru
        _
      %p151 = scmp.lt.s32.totalorder %s16, 4
      // Predicated region
      $region21: #{rga_pallas.1} parent=5 // pred_check
        %p152 = pneg %p151
      $region22: #{rga_pallas.1} parent=5 // pred_check_branch
        %154 = sbr.rel (%p152) target = $region24
      $region23: #{rga_pallas.1} parent=5 // pred_region
        // Predicated region
        $region25: #{rga_pallas.1} parent=23 // pred_check
          %p155 = pneg %p36
        $region26: #{rga_pallas.1} parent=23 // pred_check_branch
          %157 = sbr.rel (%p155) target = $region28
        $region27: #{rga_pallas.1} parent=23 // pred_region
          %s158 = sand.u32 %s26, 1
          %s159 = scalar_lea.sflag [#allocation3], %s158
          %s160 = sand.u32 %s26, 1
          %s161 = smul.addr %s160, 32
          %s162 = scalar_lea.vmem [#allocation2], %s161
          %s164 = ssub.s32 512, 512
          %165 = vsyncadd %s159, %s164
          %s166 = smul.addr %s16, 8
          %s167 = smul.addr %s166, 64
          %s168 = scalar_lea.hbm %s0, %s167
          %s169 = sshll.u32 %s162, 4
          %s170 = int_to_ptr.vmem [resolvable:$true] %s169
          %175 = dma.hbm_to_vmem [thread:$0]  %s168, 512, %s170, %s159, 64, 64, 4
        $region28: #{rga_pallas.1} parent=23 // pred_fallthru
          _
      $region24: #{rga_pallas.1} parent=5 // pred_fallthru
        _
      %p176 = scmp.le.s32.totalorder 1, %s16
      %p177 = scmp.lt.s32.totalorder %s16, 5
      %p178 = pnand %p176, %p177
      %p179 = pneg %p178
      // Predicated region
      $region29: #{rga_pallas.1} parent=5 // pred_check
        _
      $region30: #{rga_pallas.1} parent=5 // pred_check_branch
        %181 = sbr.rel (%p178) target = $region32
      $region31: #{rga_pallas.1} parent=5 // pred_region
        %s182 = ssub.s32 %s16, 1
        %s183 = sand.u32 %s29, 1
        %s184 = scalar_lea.sflag [#allocation3], %s183
        %s185 = sand.u32 %s29, 1
        %s186 = smul.addr %s185, 32
        %s187 = scalar_lea.vmem [#allocation2], %s186
        // Predicated region
        $region33: #{rga_pallas.1} parent=31 // pred_check
          %p188 = pneg %p42
        $region34: #{rga_pallas.1} parent=31 // pred_check_branch
          %190 = sbr.rel (%p188) target = $region36
        $region35: #{rga_pallas.1} parent=31 // pred_region
          %191 = dma.done %s184, 512
        $region36: #{rga_pallas.1} parent=31 // pred_fallthru
          _
        // Predicated region
        $region37: #{rga_pallas.1} parent=31 // pred_check
          %p192 = pneg %p63
        $region38: #{rga_pallas.1} parent=31 // pred_check_branch
          %194 = sbr.rel (%p192) target = $region40
        $region39: #{rga_pallas.1} parent=31 // pred_region
          %195 = dma.done [#allocation6], 640
        $region40: #{rga_pallas.1} parent=31 // pred_fallthru
          _
        // Predicated region
        $region41: #{rga_pallas.1} parent=31 // pred_check
          %p196 = pneg %p84
        $region42: #{rga_pallas.1} parent=31 // pred_check_branch
          %198 = sbr.rel (%p196) target = $region44
        $region43: #{rga_pallas.1} parent=31 // pred_region
          %199 = dma.done [#allocation6], 2304
        $region44: #{rga_pallas.1} parent=31 // pred_fallthru
          _
        %s200 = sand.u32 %s29, 1
        %s201 = scalar_lea.sflag [#allocation3], %s200
        %s202 = sand.u32 %s29, 1
        %s203 = smul.addr %s202, 32
        %s204 = scalar_lea.vmem [#allocation2], %s203
        %p205 = pneg %p42
        %p206 = pneg %p39
        %p207 = pneg %p63
        %p208 = pneg %p60
        %p209 = pneg %p84
        %p210 = pneg %p81
        %p211 = pneg %p110
        %p212 = pneg %p107
        %s213 = sand.u32 %s97, 1
        %s214 = scalar_lea.sflag [#allocation4], %s213
        %s215 = sand.u32 %s97, 1
        %s216 = smul.addr %s215, 64
        %s217 = scalar_lea.vmem [#allocation8], %s216
        %v219 = vld [vmem:[%s187] sm:$0xf]
        %v220 = vld [vmem:[%s187 + $0x4] sm:$0xf]
        %v221 = vld [vmem:[%s187 + $0x8] sm:$0xf]
        %v222 = vld [vmem:[%s187 + $0xc] sm:$0xf]
        %v223 = vld [vmem:[%s187 + $0x10] sm:$0xf]
        %v224 = vld [vmem:[%s187 + $0x14] sm:$0xf]
        %v225 = vld [vmem:[%s187 + $0x18] sm:$0xf]
        %v226 = vld [vmem:[%s187 + $0x1c] sm:$0xf]
        %v227 = vld [vmem:[#allocation5] sm:$0xf]
        %v228 = vld [vmem:[#allocation5 + $0x4] sm:$0xf]
        %v229 = vld [vmem:[#allocation5 + $0x8] sm:$0xf]
        %v230 = vld [vmem:[#allocation5 + $0xc] sm:$0xf]
        %v231 = vld [vmem:[#allocation5 + $0x10] sm:$0xf]
        %v232 = vld [vmem:[#allocation5 + $0x14] sm:$0xf]
        %v233 = vld [vmem:[#allocation5 + $0x18] sm:$0xf]
        %v234 = vld [vmem:[#allocation5 + $0x1c] sm:$0xf]
        %v235 = vld [vmem:[#allocation5 + $0x20] sm:$0xf]
        %v236 = vld [vmem:[#allocation5 + $0x24] sm:$0xf]
        %v237 = vld [vmem:[#allocation7] sm:$0xff]
        %v238 = vld [vmem:[#allocation7 + $0x8] sm:$0xff]
        %v239 = vld [vmem:[#allocation7 + $0x10] sm:$0xff]
        %v240 = vld [vmem:[#allocation7 + $0x18] sm:$0xff]
        %v241 = vld [vmem:[#allocation7 + $0x20] sm:$0x1]
        %v242 = vld [vmem:[#allocation7 + $0x28] sm:$0x1]
        %v243 = vld [vmem:[#allocation7 + $0x30] sm:$0x1]
        %v244 = vld [vmem:[#allocation7 + $0x38] sm:$0x1]
        %v245 = vld [vmem:[#allocation7 + $0x40] sm:$0x1]
        %v246 = vld [vmem:[#allocation7 + $0x48] sm:$0xff]
        %v247 = vld [vmem:[#allocation7 + $0x50] sm:$0xff]
        %v248 = vld [vmem:[#allocation7 + $0x58] sm:$0xff]
        %v249 = vld [vmem:[#allocation7 + $0x60] sm:$0xff]
        %v250 = vld [vmem:[#allocation7 + $0x68] sm:$0x1]
        %v251 = vld [vmem:[#allocation7 + $0x70] sm:$0x1]
        %v252 = vld [vmem:[#allocation7 + $0x78] sm:$0x1]
        %v253 = vld [vmem:[#allocation7 + $0x80] sm:$0x1]
        %v254 = vld [vmem:[#allocation7 + $0x88] sm:$0x1]
        %256 = vset.pattern.permute.xlu0 0
        %257 = vperm.xlu0 %256, %v237
        %v258 = vpop.permute.xlu0 %257
        %261 = vset.pattern.permute.xlu0 0
        %262 = vperm.xlu0 %261, %v238
        %v263 = vpop.permute.xlu0 %262
        %266 = vset.pattern.permute.xlu0 0
        %267 = vperm.xlu0 %266, %v239
        %v268 = vpop.permute.xlu0 %267
        %v273 = vunpack.c.l.b16 %v227
        %v274 = vunpack.c.l.b16 %v228
        %v275 = vunpack.c.l.b16 %v229
        %v276 = vpack.c.b16 %v274, %v273
        %v277 = vpack.c.b16 %v275, %v275
        %v286 = vunpack.c.l.b16 %v219
        %v287 = vunpack.c.l.b16 %v220
        %v288 = vunpack.c.l.b16 %v221
        %v289 = vunpack.c.l.b16 %v222
        %v290 = vunpack.c.l.b16 %v223
        %v291 = vunpack.c.l.b16 %v224
        %v292 = vunpack.c.l.b16 %v225
        %v293 = vunpack.c.l.b16 %v226
        %v294 = vpack.c.b16 %v287, %v286
        %v295 = vpack.c.b16 %v289, %v288
        %v296 = vpack.c.b16 %v291, %v290
        %v297 = vpack.c.b16 %v293, %v292
        %vm302 = vcmask 523264
        %v304 = vsel %vm302, %v276, 0
        %v307 = vsel %vm302, %v277, 0
        %309 = vmatprep.subr.bf16.mxu0 0
        %310 = vmatpush1.bf16.msra.mxu0 %v294
        %311 = vmatprep.subr.bf16.mxu0 0
        %312 = vmatpush1.bf16.msra.mxu0 %v295
        %313 = vmatprep.subr.bf16.mxu0 0
        %314 = vmatpush1.bf16.msra.mxu0 %v296
        %315 = vmatprep.subr.bf16.mxu0 0
        %316 = vmatpush1.bf16.msra.mxu0 %v297
        %317 = vmatprep.subr.bf16.mxu0 0
        %318 = vmatpush1.bf16.msra.mxu0 0
        %319 = vmatprep.subr.bf16.mxu0 0
        %320 = vmatpush1.bf16.msra.mxu0 0
        %321 = vmatprep.subr.bf16.mxu0 0
        %322 = vmatpush1.bf16.msra.mxu0 0
        %323 = vmatprep.subr.bf16.mxu0 0
        %324 = vmatpush1.bf16.msra.mxu0 0
        %325 = vmatprep.subr.bf16.mxu0 0
        %326 = vmatpush1.bf16.msra.mxu0 0
        %327 = vmatprep.subr.bf16.mxu0 0
        %328 = vmatpush1.bf16.msra.mxu0 0
        %329 = vmatprep.subr.bf16.mxu0 0
        %330 = vmatpush1.bf16.msra.mxu0 0
        %331 = vmatprep.subr.bf16.mxu0 0
        %332 = vmatpush1.bf16.msra.mxu0 0
        %333 = vmatprep.subr.bf16.mxu0 0
        %334 = vmatpush1.bf16.msra.mxu0 0
        %335 = vmatprep.subr.bf16.mxu0 0
        %336 = vmatpush1.bf16.msra.mxu0 0
        %337 = vmatprep.subr.bf16.mxu0 0
        %338 = vmatpush1.bf16.msra.mxu0 0
        %339 = vmatprep.subr.bf16.mxu0 0
        %340 = vmatpush1.bf16.msra.mxu0 0
        %341 = vmatprep.mubr.bf16.mxu0 0
        %342 = vmatmul.mubr.bf16.gmra.mrb[0].mxu0 %v304
        %v343 = vpop.f32.mrb[0].mxu0
        %v344 = vadd.f32 %v258, %v343
        %v345 = vpop.f32.mrb[0].mxu0
        %v346 = vpop.f32.mrb[0].mxu0
        %v347 = vadd.f32 %v263, %v346
        %v348 = vpop.f32.mrb[0].mxu0
        %349 = vmatprep.mubr.bf16.mxu0 0
        %350 = vmatmul.mubr.bf16.gmra.mrb[0].mxu0 %v307
        %v351 = vpop.f32.mrb[0].mxu0
        %v352 = vadd.f32 %v268, %v351
        %v353 = vpop.f32.mrb[0].mxu0
        %v354 = vpop.f32.mrb[0].mxu0
        %v355 = vpop.f32.mrb[0].mxu0
        %356 = vdwg.mxu0
        %v357 = vmax.f32 %v344, 0.0
        %v358 = vmax.f32 %v347, 0.0
        %v359 = vmax.f32 %v352, 0.0
        %v360 = vrot.slane %v359, 4
        %v361 = vadd.f32 %v359, %v360
        %v362 = vrot.slane %v361, 2
        %v363 = vadd.f32 %v361, %v362
        %v364 = vrot.slane %v363, 1
        %v365 = vadd.f32 %v363, %v364
        %v366 = vrcp.pop 8.0
        %v367 = vmul.f32 %v365, %v366
        %v368 = vpack.c.bf16 %v357, %v357
        %v369 = vpack.c.bf16 %v358, %v358
        %v371 = vsel %vm302, %v230, 0
        %v374 = vsel %vm302, %v369, 0
        %376 = vmatprep.subr.bf16.mxu0 0
        %377 = vmatpush1.bf16.xpose.msra.mxu0 %v374
        %378 = vmatprep.subr.bf16.mxu0 0
        %379 = vmatpush1.bf16.xpose.msra.mxu0 0
        %380 = vmatprep.subr.bf16.mxu0 0
        %381 = vmatpush1.bf16.xpose.msra.mxu0 0
        %382 = vmatprep.subr.bf16.mxu0 0
        %383 = vmatpush1.bf16.xpose.msra.mxu0 0
        %384 = vmatprep.subr.bf16.mxu0 0
        %385 = vmatpush1.bf16.xpose.msra.mxu0 0
        %386 = vmatprep.subr.bf16.mxu0 0
        %387 = vmatpush1.bf16.xpose.msra.mxu0 0
        %388 = vmatprep.subr.bf16.mxu0 0
        %389 = vmatpush1.bf16.xpose.msra.mxu0 0
        %390 = vmatprep.subr.bf16.mxu0 0
        %391 = vmatpush1.bf16.xpose.msra.mxu0 0
        %392 = vmatprep.subr.bf16.mxu0 0
        %393 = vmatpush1.bf16.xpose.msra.mxu0 0
        %394 = vmatprep.subr.bf16.mxu0 0
        %395 = vmatpush1.bf16.xpose.msra.mxu0 0
        %396 = vmatprep.subr.bf16.mxu0 0
        %397 = vmatpush1.bf16.xpose.msra.mxu0 0
        %398 = vmatprep.subr.bf16.mxu0 0
        %399 = vmatpush1.bf16.xpose.msra.mxu0 0
        %400 = vmatprep.subr.bf16.mxu0 0
        %401 = vmatpush1.bf16.xpose.msra.mxu0 0
        %402 = vmatprep.subr.bf16.mxu0 0
        %403 = vmatpush1.bf16.xpose.msra.mxu0 0
        %404 = vmatprep.subr.bf16.mxu0 0
        %405 = vmatpush1.bf16.xpose.msra.mxu0 0
        %406 = vmatprep.subr.bf16.mxu0 0
        %407 = vmatpush1.bf16.xpose.msra.mxu0 0
        %408 = vmatprep.mubr.bf16.mxu0 0
        %409 = vmatmul.mubr.bf16.gmra.mrb[0].mxu0 %v371
        %v410 = vpop.f32.mrb[0].mxu0
        %v411 = vadd.f32 0.0, %v410
        %v412 = vpop.f32.mrb[0].mxu0
        %v413 = vpop.f32.mrb[0].mxu0
        %v414 = vpop.f32.mrb[0].mxu0
        %415 = vdwg.mxu0
        %v417 = vsel %vm302, %v231, 0
        %v420 = vsel %vm302, %v368, 0
        %422 = vmatprep.subr.bf16.mxu0 0
        %423 = vmatpush1.bf16.xpose.msra.mxu0 %v420
        %424 = vmatprep.subr.bf16.mxu0 0
        %425 = vmatpush1.bf16.xpose.msra.mxu0 0
        %426 = vmatprep.subr.bf16.mxu0 0
        %427 = vmatpush1.bf16.xpose.msra.mxu0 0
        %428 = vmatprep.subr.bf16.mxu0 0
        %429 = vmatpush1.bf16.xpose.msra.mxu0 0
        %430 = vmatprep.subr.bf16.mxu0 0
        %431 = vmatpush1.bf16.xpose.msra.mxu0 0
        %432 = vmatprep.subr.bf16.mxu0 0
        %433 = vmatpush1.bf16.xpose.msra.mxu0 0
        %434 = vmatprep.subr.bf16.mxu0 0
        %435 = vmatpush1.bf16.xpose.msra.mxu0 0
        %436 = vmatprep.subr.bf16.mxu0 0
        %437 = vmatpush1.bf16.xpose.msra.mxu0 0
        %438 = vmatprep.subr.bf16.mxu0 0
        %439 = vmatpush1.bf16.xpose.msra.mxu0 0
        %440 = vmatprep.subr.bf16.mxu0 0
        %441 = vmatpush1.bf16.xpose.msra.mxu0 0
        %442 = vmatprep.subr.bf16.mxu0 0
        %443 = vmatpush1.bf16.xpose.msra.mxu0 0
        %444 = vmatprep.subr.bf16.mxu0 0
        %445 = vmatpush1.bf16.xpose.msra.mxu0 0
        %446 = vmatprep.subr.bf16.mxu0 0
        %447 = vmatpush1.bf16.xpose.msra.mxu0 0
        %448 = vmatprep.subr.bf16.mxu0 0
        %449 = vmatpush1.bf16.xpose.msra.mxu0 0
        %450 = vmatprep.subr.bf16.mxu0 0
        %451 = vmatpush1.bf16.xpose.msra.mxu0 0
        %452 = vmatprep.subr.bf16.mxu0 0
        %453 = vmatpush1.bf16.xpose.msra.mxu0 0
        %454 = vmatprep.mubr.bf16.mxu0 0
        %455 = vmatmul.mubr.bf16.gmra.mrb[0].mxu0 %v417
        %v456 = vpop.f32.mrb[0].mxu0
        %v457 = vadd.f32 0.0, %v456
        %v458 = vpop.f32.mrb[0].mxu0
        %v459 = vpop.f32.mrb[0].mxu0
        %v460 = vpop.f32.mrb[0].mxu0
        %461 = vdwg.mxu0
        %463 = vrot.lane.b32.xlu0 %v457, 8
        %v464 = vpop.permute.xlu0 %463
        %vm466 = vcmask 64512
        %v467 = vsel %vm466, %v411, %v464
        %469 = vset.pattern.permute.xlu0 0
        %470 = vperm.xlu0 %469, %v240
        %v471 = vpop.permute.xlu0 %470
        %vm473 = vcmask 130048
        %v475 = vsel %vm473, %v467, 0
        %477 = vmatprep.subr.mxu0 0.0
        %478 = vmatpush1.msra.mxu0 %v357
        %479 = vmatprep.subr.mxu0 0.0
        %480 = vmatpush1.msra.mxu0 %v358
        %481 = vmatprep.subr.mxu0 0.0
        %482 = vmatpush1.msra.mxu0 0.0
        %483 = vmatprep.subr.mxu0 0.0
        %484 = vmatpush1.msra.mxu0 0.0
        %485 = vmatprep.subr.mxu0 0.0
        %486 = vmatpush1.msra.mxu0 0.0
        %487 = vmatprep.subr.mxu0 0.0
        %488 = vmatpush1.msra.mxu0 0.0
        %489 = vmatprep.subr.mxu0 0.0
        %490 = vmatpush1.msra.mxu0 0.0
        %491 = vmatprep.subr.mxu0 0.0
        %492 = vmatpush1.msra.mxu0 0.0
        %493 = vmatprep.subr.mxu0 0.0
        %494 = vmatpush1.msra.mxu0 0.0
        %495 = vmatprep.subr.mxu0 0.0
        %496 = vmatpush1.msra.mxu0 0.0
        %497 = vmatprep.subr.mxu0 0.0
        %498 = vmatpush1.msra.mxu0 0.0
        %499 = vmatprep.subr.mxu0 0.0
        %500 = vmatpush1.msra.mxu0 0.0
        %501 = vmatprep.subr.mxu0 0.0
        %502 = vmatpush1.msra.mxu0 0.0
        %503 = vmatprep.subr.mxu0 0.0
        %504 = vmatpush1.msra.mxu0 0.0
        %505 = vmatprep.subr.mxu0 0.0
        %506 = vmatpush1.msra.mxu0 0.0
        %507 = vmatprep.subr.mxu0 0.0
        %508 = vmatpush1.msra.mxu0 0.0
        %509 = vmatprep.subr.mxu0 0.0
        %510 = vmatpush1.msra.mxu0 0.0
        %511 = vmatprep.subr.mxu0 0.0
        %512 = vmatpush1.msra.mxu0 0.0
        %513 = vmatprep.subr.mxu0 0.0
        %514 = vmatpush1.msra.mxu0 0.0
        %515 = vmatprep.subr.mxu0 0.0
        %516 = vmatpush1.msra.mxu0 0.0
        %517 = vmatprep.subr.mxu0 0.0
        %518 = vmatpush1.msra.mxu0 0.0
        %519 = vmatprep.subr.mxu0 0.0
        %520 = vmatpush1.msra.mxu0 0.0
        %521 = vmatprep.subr.mxu0 0.0
        %522 = vmatpush1.msra.mxu0 0.0
        %523 = vmatprep.subr.mxu0 0.0
        %524 = vmatpush1.msra.mxu0 0.0
        %525 = vmatprep.subr.mxu0 0.0
        %526 = vmatpush1.msra.mxu0 0.0
        %527 = vmatprep.subr.mxu0 0.0
        %528 = vmatpush1.msra.mxu0 0.0
        %529 = vmatprep.subr.mxu0 0.0
        %530 = vmatpush1.msra.mxu0 0.0
        %531 = vmatprep.subr.mxu0 0.0
        %532 = vmatpush1.msra.mxu0 0.0
        %533 = vmatprep.subr.mxu0 0.0
        %534 = vmatpush1.msra.mxu0 0.0
        %535 = vmatprep.subr.mxu0 0.0
        %536 = vmatpush1.msra.mxu0 0.0
        %537 = vmatprep.subr.mxu0 0.0
        %538 = vmatpush1.msra.mxu0 0.0
        %539 = vmatprep.subr.mxu0 0.0
        %540 = vmatpush1.msra.mxu0 0.0
        %541 = vmatprep.mubr.f32.mxu0 0.0
        %542 = vmatmul.mubr.f32.gmra.mrb[0].mxu0 %v475
        %v543 = vpop.f32.mrb[0].mxu0
        %v544 = vadd.f32 %v471, %v543
        %v545 = vpop.f32.mrb[0].mxu0
        %546 = vdwg.mxu0
        %v547 = vmax.f32 %v544, 0.0
        %549 = vset.pattern.permute.xlu0 0
        %550 = vperm.xlu0 %549, %v241
        %v551 = vpop.permute.xlu0 %550
        %v553 = vmul.f32 %v551, %v367
        %v555 = vsel %vm466, %v242, 0
        %557 = vmatprep.subr.mxu0 0.0
        %558 = vmatpush1.msra.mxu0 %v547
        %559 = vmatprep.subr.mxu0 0.0
        %560 = vmatpush1.msra.mxu0 0.0
        %561 = vmatprep.subr.mxu0 0.0
        %562 = vmatpush1.msra.mxu0 0.0
        %563 = vmatprep.subr.mxu0 0.0
        %564 = vmatpush1.msra.mxu0 0.0
        %565 = vmatprep.subr.mxu0 0.0
        %566 = vmatpush1.msra.mxu0 0.0
        %567 = vmatprep.subr.mxu0 0.0
        %568 = vmatpush1.msra.mxu0 0.0
        %569 = vmatprep.subr.mxu0 0.0
        %570 = vmatpush1.msra.mxu0 0.0
        %571 = vmatprep.subr.mxu0 0.0
        %572 = vmatpush1.msra.mxu0 0.0
        %573 = vmatprep.subr.mxu0 0.0
        %574 = vmatpush1.msra.mxu0 0.0
        %575 = vmatprep.subr.mxu0 0.0
        %576 = vmatpush1.msra.mxu0 0.0
        %577 = vmatprep.subr.mxu0 0.0
        %578 = vmatpush1.msra.mxu0 0.0
        %579 = vmatprep.subr.mxu0 0.0
        %580 = vmatpush1.msra.mxu0 0.0
        %581 = vmatprep.subr.mxu0 0.0
        %582 = vmatpush1.msra.mxu0 0.0
        %583 = vmatprep.subr.mxu0 0.0
        %584 = vmatpush1.msra.mxu0 0.0
        %585 = vmatprep.subr.mxu0 0.0
        %586 = vmatpush1.msra.mxu0 0.0
        %587 = vmatprep.subr.mxu0 0.0
        %588 = vmatpush1.msra.mxu0 0.0
        %589 = vmatprep.subr.mxu0 0.0
        %590 = vmatpush1.msra.mxu0 0.0
        %591 = vmatprep.subr.mxu0 0.0
        %592 = vmatpush1.msra.mxu0 0.0
        %593 = vmatprep.subr.mxu0 0.0
        %594 = vmatpush1.msra.mxu0 0.0
        %595 = vmatprep.subr.mxu0 0.0
        %596 = vmatpush1.msra.mxu0 0.0
        %597 = vmatprep.subr.mxu0 0.0
        %598 = vmatpush1.msra.mxu0 0.0
        %599 = vmatprep.subr.mxu0 0.0
        %600 = vmatpush1.msra.mxu0 0.0
        %601 = vmatprep.subr.mxu0 0.0
        %602 = vmatpush1.msra.mxu0 0.0
        %603 = vmatprep.subr.mxu0 0.0
        %604 = vmatpush1.msra.mxu0 0.0
        %605 = vmatprep.subr.mxu0 0.0
        %606 = vmatpush1.msra.mxu0 0.0
        %607 = vmatprep.subr.mxu0 0.0
        %608 = vmatpush1.msra.mxu0 0.0
        %609 = vmatprep.subr.mxu0 0.0
        %610 = vmatpush1.msra.mxu0 0.0
        %611 = vmatprep.subr.mxu0 0.0
        %612 = vmatpush1.msra.mxu0 0.0
        %613 = vmatprep.subr.mxu0 0.0
        %614 = vmatpush1.msra.mxu0 0.0
        %615 = vmatprep.subr.mxu0 0.0
        %616 = vmatpush1.msra.mxu0 0.0
        %617 = vmatprep.subr.mxu0 0.0
        %618 = vmatpush1.msra.mxu0 0.0
        %619 = vmatprep.subr.mxu0 0.0
        %620 = vmatpush1.msra.mxu0 0.0
        %621 = vmatprep.mubr.f32.mxu0 0.0
        %622 = vmatmul.mubr.f32.gmra.mrb[0].mxu0 %v555
        %v623 = vpop.f32.mrb[0].mxu0
        %v624 = vadd.f32 0.0, %v623
        %v625 = vpop.f32.mrb[0].mxu0
        %626 = vdwg.mxu0
        %v627 = vadd.f32 %v553, %v624
        %629 = vset.pattern.permute.xlu0 0
        %630 = vperm.xlu0 %629, %v243
        %v631 = vpop.permute.xlu0 %630
        %v633 = vadd.f32 %v627, %v631
        %v634 = vmax.f32 %v633, 0.0
        %636 = vset.pattern.permute.xlu0 0
        %637 = vperm.xlu0 %636, %v245
        %v638 = vpop.permute.xlu0 %637
        %vm640 = vcmask 7168
        %v642 = vsel %vm640, %v244, 0
        %vm644 = vcmask 1040384
        %v646 = vsel %vm644, %v634, 0
        %648 = vmatprep.subr.mxu0 0.0
        %649 = vmatpush1.msra.mxu0 %v646
        %650 = vmatprep.subr.mxu0 0.0
        %651 = vmatpush1.msra.mxu0 0.0
        %652 = vmatprep.subr.mxu0 0.0
        %653 = vmatpush1.msra.mxu0 0.0
        %654 = vmatprep.subr.mxu0 0.0
        %655 = vmatpush1.msra.mxu0 0.0
        %656 = vmatprep.subr.mxu0 0.0
        %657 = vmatpush1.msra.mxu0 0.0
        %658 = vmatprep.subr.mxu0 0.0
        %659 = vmatpush1.msra.mxu0 0.0
        %660 = vmatprep.subr.mxu0 0.0
        %661 = vmatpush1.msra.mxu0 0.0
        %662 = vmatprep.subr.mxu0 0.0
        %663 = vmatpush1.msra.mxu0 0.0
        %664 = vmatprep.subr.mxu0 0.0
        %665 = vmatpush1.msra.mxu0 0.0
        %666 = vmatprep.subr.mxu0 0.0
        %667 = vmatpush1.msra.mxu0 0.0
        %668 = vmatprep.subr.mxu0 0.0
        %669 = vmatpush1.msra.mxu0 0.0
        %670 = vmatprep.subr.mxu0 0.0
        %671 = vmatpush1.msra.mxu0 0.0
        %672 = vmatprep.subr.mxu0 0.0
        %673 = vmatpush1.msra.mxu0 0.0
        %674 = vmatprep.subr.mxu0 0.0
        %675 = vmatpush1.msra.mxu0 0.0
        %676 = vmatprep.subr.mxu0 0.0
        %677 = vmatpush1.msra.mxu0 0.0
        %678 = vmatprep.subr.mxu0 0.0
        %679 = vmatpush1.msra.mxu0 0.0
        %680 = vmatprep.subr.mxu0 0.0
        %681 = vmatpush1.msra.mxu0 0.0
        %682 = vmatprep.subr.mxu0 0.0
        %683 = vmatpush1.msra.mxu0 0.0
        %684 = vmatprep.subr.mxu0 0.0
        %685 = vmatpush1.msra.mxu0 0.0
        %686 = vmatprep.subr.mxu0 0.0
        %687 = vmatpush1.msra.mxu0 0.0
        %688 = vmatprep.subr.mxu0 0.0
        %689 = vmatpush1.msra.mxu0 0.0
        %690 = vmatprep.subr.mxu0 0.0
        %691 = vmatpush1.msra.mxu0 0.0
        %692 = vmatprep.subr.mxu0 0.0
        %693 = vmatpush1.msra.mxu0 0.0
        %694 = vmatprep.subr.mxu0 0.0
        %695 = vmatpush1.msra.mxu0 0.0
        %696 = vmatprep.subr.mxu0 0.0
        %697 = vmatpush1.msra.mxu0 0.0
        %698 = vmatprep.subr.mxu0 0.0
        %699 = vmatpush1.msra.mxu0 0.0
        %700 = vmatprep.subr.mxu0 0.0
        %701 = vmatpush1.msra.mxu0 0.0
        %702 = vmatprep.subr.mxu0 0.0
        %703 = vmatpush1.msra.mxu0 0.0
        %704 = vmatprep.subr.mxu0 0.0
        %705 = vmatpush1.msra.mxu0 0.0
        %706 = vmatprep.subr.mxu0 0.0
        %707 = vmatpush1.msra.mxu0 0.0
        %708 = vmatprep.subr.mxu0 0.0
        %709 = vmatpush1.msra.mxu0 0.0
        %710 = vmatprep.subr.mxu0 0.0
        %711 = vmatpush1.msra.mxu0 0.0
        %712 = vmatprep.mubr.f32.mxu0 0.0
        %713 = vmatmul.mubr.f32.gmra.mrb[0].mxu0 %v642
        %v714 = vpop.f32.mrb[0].mxu0
        %v715 = vadd.f32 %v638, %v714
        %v716 = vpop.f32.mrb[0].mxu0
        %717 = vdwg.mxu0
        %v718 = vxor.u32 %v715, 2147483648
        %v719 = vmul.f32 %v718, 1.442695
        %v720 = vpow.pop %v719
        %v721 = vadd.f32 %v720, 1.0
        %v722 = vrcp.pop %v721
        %v723 = vmul.f32 1.0, %v722
        %v724 = vunpack.c.l.bf16 %v219
        %v725 = vunpack.c.l.bf16 %v220
        %v726 = vunpack.c.l.bf16 %v221
        %v727 = vunpack.c.l.bf16 %v222
        %v728 = vunpack.c.l.bf16 %v223
        %v729 = vunpack.c.l.bf16 %v224
        %v730 = vunpack.c.l.bf16 %v225
        %v731 = vunpack.c.l.bf16 %v226
        %v732 = vlaneseq
        %v733 = vshrl.u32 %v732, 7
        %v734 = vsub.s32 0, %v733
        %v735 = vrot.slane %v723, %v734
        %v736 = vmul.f32 %v735, %v724
        %v737 = vmul.f32 %v735, %v725
        %v738 = vmul.f32 %v735, %v726
        %v739 = vmul.f32 %v735, %v727
        %v740 = vmul.f32 %v735, %v728
        %v741 = vmul.f32 %v735, %v729
        %v742 = vmul.f32 %v735, %v730
        %v743 = vmul.f32 %v735, %v731
        %v744 = vpack.c.bf16 %v737, %v736
        %v745 = vpack.c.bf16 %v739, %v738
        %v746 = vpack.c.bf16 %v741, %v740
        %v747 = vpack.c.bf16 %v743, %v742
        %749 = vset.pattern.permute.xlu0 0
        %750 = vperm.xlu0 %749, %v246
        %v751 = vpop.permute.xlu0 %750
        %754 = vset.pattern.permute.xlu0 0
        %755 = vperm.xlu0 %754, %v247
        %v756 = vpop.permute.xlu0 %755
        %759 = vset.pattern.permute.xlu0 0
        %760 = vperm.xlu0 %759, %v248
        %v761 = vpop.permute.xlu0 %760
        %v766 = vunpack.c.l.b16 %v232
        %v767 = vunpack.c.l.b16 %v233
        %v768 = vunpack.c.l.b16 %v234
        %v769 = vpack.c.b16 %v767, %v766
        %v770 = vpack.c.b16 %v768, %v768
        %v772 = vsel %vm302, %v769, 0
        %v775 = vsel %vm302, %v770, 0
        %v778 = vsel %vm302, %v744, 0
        %v781 = vsel %vm302, %v745, 0
        %v784 = vsel %vm302, %v746, 0
        %v787 = vsel %vm302, %v747, 0
        %789 = vmatprep.subr.bf16.mxu0 0
        %790 = vmatpush1.bf16.xpose.msra.mxu0 %v778
        %791 = vmatprep.subr.bf16.mxu0 0
        %792 = vmatpush1.bf16.xpose.msra.mxu0 %v781
        %793 = vmatprep.subr.bf16.mxu0 0
        %794 = vmatpush1.bf16.xpose.msra.mxu0 %v784
        %795 = vmatprep.subr.bf16.mxu0 0
        %796 = vmatpush1.bf16.xpose.msra.mxu0 %v787
        %797 = vmatprep.subr.bf16.mxu0 0
        %798 = vmatpush1.bf16.xpose.msra.mxu0 0
        %799 = vmatprep.subr.bf16.mxu0 0
        %800 = vmatpush1.bf16.xpose.msra.mxu0 0
        %801 = vmatprep.subr.bf16.mxu0 0
        %802 = vmatpush1.bf16.xpose.msra.mxu0 0
        %803 = vmatprep.subr.bf16.mxu0 0
        %804 = vmatpush1.bf16.xpose.msra.mxu0 0
        %805 = vmatprep.subr.bf16.mxu0 0
        %806 = vmatpush1.bf16.xpose.msra.mxu0 0
        %807 = vmatprep.subr.bf16.mxu0 0
        %808 = vmatpush1.bf16.xpose.msra.mxu0 0
        %809 = vmatprep.subr.bf16.mxu0 0
        %810 = vmatpush1.bf16.xpose.msra.mxu0 0
        %811 = vmatprep.subr.bf16.mxu0 0
        %812 = vmatpush1.bf16.xpose.msra.mxu0 0
        %813 = vmatprep.subr.bf16.mxu0 0
        %814 = vmatpush1.bf16.xpose.msra.mxu0 0
        %815 = vmatprep.subr.bf16.mxu0 0
        %816 = vmatpush1.bf16.xpose.msra.mxu0 0
        %817 = vmatprep.subr.bf16.mxu0 0
        %818 = vmatpush1.bf16.xpose.msra.mxu0 0
        %819 = vmatprep.subr.bf16.mxu0 0
        %820 = vmatpush1.bf16.xpose.msra.mxu0 0
        %821 = vmatprep.mubr.bf16.mxu0 0
        %822 = vmatmul.mubr.bf16.gmra.mrb[0].mxu0 %v772
        %v823 = vpop.f32.mrb[0].mxu0
        %v824 = vadd.f32 %v751, %v823
        %v825 = vpop.f32.mrb[0].mxu0
        %v826 = vpop.f32.mrb[0].mxu0
        %v827 = vadd.f32 %v756, %v826
        %v828 = vpop.f32.mrb[0].mxu0
        %829 = vmatprep.mubr.bf16.mxu0 0
        %830 = vmatmul.mubr.bf16.gmra.mrb[0].mxu0 %v775
        %v831 = vpop.f32.mrb[0].mxu0
        %v832 = vadd.f32 %v761, %v831
        %v833 = vpop.f32.mrb[0].mxu0
        %v834 = vpop.f32.mrb[0].mxu0
        %v835 = vpop.f32.mrb[0].mxu0
        %836 = vdwg.mxu0
        %v837 = vmax.f32 %v824, 0.0
        %v838 = vmax.f32 %v827, 0.0
        %v839 = vmax.f32 %v832, 0.0
        %v840 = vsel %vm302, %v839, 0.0
        %v841 = vrot.slane %v840, 4
        %v842 = vadd.f32 %v840, %v841
        %v843 = vrot.slane %v842, 2
        %v844 = vadd.f32 %v842, %v843
        %v845 = vrot.slane %v844, 1
        %v846 = vadd.f32 %v844, %v845
        %v847 = vmul.f32 %v846, %v366
        %v848 = vpack.c.bf16 %v837, %v837
        %v849 = vpack.c.bf16 %v838, %v838
        %v851 = vsel %vm302, %v235, 0
        %v854 = vsel %vm302, %v849, 0
        %856 = vmatprep.subr.bf16.mxu0 0
        %857 = vmatpush1.bf16.xpose.msra.mxu0 %v854
        %858 = vmatprep.subr.bf16.mxu0 0
        %859 = vmatpush1.bf16.xpose.msra.mxu0 0
        %860 = vmatprep.subr.bf16.mxu0 0
        %861 = vmatpush1.bf16.xpose.msra.mxu0 0
        %862 = vmatprep.subr.bf16.mxu0 0
        %863 = vmatpush1.bf16.xpose.msra.mxu0 0
        %864 = vmatprep.subr.bf16.mxu0 0
        %865 = vmatpush1.bf16.xpose.msra.mxu0 0
        %866 = vmatprep.subr.bf16.mxu0 0
        %867 = vmatpush1.bf16.xpose.msra.mxu0 0
        %868 = vmatprep.subr.bf16.mxu0 0
        %869 = vmatpush1.bf16.xpose.msra.mxu0 0
        %870 = vmatprep.subr.bf16.mxu0 0
        %871 = vmatpush1.bf16.xpose.msra.mxu0 0
        %872 = vmatprep.subr.bf16.mxu0 0
        %873 = vmatpush1.bf16.xpose.msra.mxu0 0
        %874 = vmatprep.subr.bf16.mxu0 0
        %875 = vmatpush1.bf16.xpose.msra.mxu0 0
        %876 = vmatprep.subr.bf16.mxu0 0
        %877 = vmatpush1.bf16.xpose.msra.mxu0 0
        %878 = vmatprep.subr.bf16.mxu0 0
        %879 = vmatpush1.bf16.xpose.msra.mxu0 0
        %880 = vmatprep.subr.bf16.mxu0 0
        %881 = vmatpush1.bf16.xpose.msra.mxu0 0
        %882 = vmatprep.subr.bf16.mxu0 0
        %883 = vmatpush1.bf16.xpose.msra.mxu0 0
        %884 = vmatprep.subr.bf16.mxu0 0
        %885 = vmatpush1.bf16.xpose.msra.mxu0 0
        %886 = vmatprep.subr.bf16.mxu0 0
        %887 = vmatpush1.bf16.xpose.msra.mxu0 0
        %888 = vmatprep.mubr.bf16.mxu0 0
        %889 = vmatmul.mubr.bf16.gmra.mrb[0].mxu0 %v851
        %v890 = vpop.f32.mrb[0].mxu0
        %v891 = vadd.f32 0.0, %v890
        %v892 = vpop.f32.mrb[0].mxu0
        %v893 = vpop.f32.mrb[0].mxu0
        %v894 = vpop.f32.mrb[0].mxu0
        %895 = vdwg.mxu0
        %v897 = vsel %vm302, %v236, 0
        %v900 = vsel %vm302, %v848, 0
        %902 = vmatprep.subr.bf16.mxu0 0
        %903 = vmatpush1.bf16.xpose.msra.mxu0 %v900
        %904 = vmatprep.subr.bf16.mxu0 0
        %905 = vmatpush1.bf16.xpose.msra.mxu0 0
        %906 = vmatprep.subr.bf16.mxu0 0
        %907 = vmatpush1.bf16.xpose.msra.mxu0 0
        %908 = vmatprep.subr.bf16.mxu0 0
        %909 = vmatpush1.bf16.xpose.msra.mxu0 0
        %910 = vmatprep.subr.bf16.mxu0 0
        %911 = vmatpush1.bf16.xpose.msra.mxu0 0
        %912 = vmatprep.subr.bf16.mxu0 0
        %913 = vmatpush1.bf16.xpose.msra.mxu0 0
        %914 = vmatprep.subr.bf16.mxu0 0
        %915 = vmatpush1.bf16.xpose.msra.mxu0 0
        %916 = vmatprep.subr.bf16.mxu0 0
        %917 = vmatpush1.bf16.xpose.msra.mxu0 0
        %918 = vmatprep.subr.bf16.mxu0 0
        %919 = vmatpush1.bf16.xpose.msra.mxu0 0
        %920 = vmatprep.subr.bf16.mxu0 0
        %921 = vmatpush1.bf16.xpose.msra.mxu0 0
        %922 = vmatprep.subr.bf16.mxu0 0
        %923 = vmatpush1.bf16.xpose.msra.mxu0 0
        %924 = vmatprep.subr.bf16.mxu0 0
        %925 = vmatpush1.bf16.xpose.msra.mxu0 0
        %926 = vmatprep.subr.bf16.mxu0 0
        %927 = vmatpush1.bf16.xpose.msra.mxu0 0
        %928 = vmatprep.subr.bf16.mxu0 0
        %929 = vmatpush1.bf16.xpose.msra.mxu0 0
        %930 = vmatprep.subr.bf16.mxu0 0
        %931 = vmatpush1.bf16.xpose.msra.mxu0 0
        %932 = vmatprep.subr.bf16.mxu0 0
        %933 = vmatpush1.bf16.xpose.msra.mxu0 0
        %934 = vmatprep.mubr.bf16.mxu0 0
        %935 = vmatmul.mubr.bf16.gmra.mrb[0].mxu0 %v897
        %v936 = vpop.f32.mrb[0].mxu0
        %v937 = vadd.f32 0.0, %v936
        %v938 = vpop.f32.mrb[0].mxu0
        %v939 = vpop.f32.mrb[0].mxu0
        %v940 = vpop.f32.mrb[0].mxu0
        %941 = vdwg.mxu0
        %943 = vrot.lane.b32.xlu0 %v937, 8
        %v944 = vpop.permute.xlu0 %943
        %v946 = vsel %vm466, %v891, %v944
        %948 = vset.pattern.permute.xlu0 0
        %949 = vperm.xlu0 %948, %v249
        %v950 = vpop.permute.xlu0 %949
        %v953 = vsel %vm473, %v946, 0
        %955 = vmatprep.subr.mxu0 0.0
        %956 = vmatpush1.msra.mxu0 %v837
        %957 = vmatprep.subr.mxu0 0.0
        %958 = vmatpush1.msra.mxu0 %v838
        %959 = vmatprep.subr.mxu0 0.0
        %960 = vmatpush1.msra.mxu0 0.0
        %961 = vmatprep.subr.mxu0 0.0
        %962 = vmatpush1.msra.mxu0 0.0
        %963 = vmatprep.subr.mxu0 0.0
        %964 = vmatpush1.msra.mxu0 0.0
        %965 = vmatprep.subr.mxu0 0.0
        %966 = vmatpush1.msra.mxu0 0.0
        %967 = vmatprep.subr.mxu0 0.0
        %968 = vmatpush1.msra.mxu0 0.0
        %969 = vmatprep.subr.mxu0 0.0
        %970 = vmatpush1.msra.mxu0 0.0
        %971 = vmatprep.subr.mxu0 0.0
        %972 = vmatpush1.msra.mxu0 0.0
        %973 = vmatprep.subr.mxu0 0.0
        %974 = vmatpush1.msra.mxu0 0.0
        %975 = vmatprep.subr.mxu0 0.0
        %976 = vmatpush1.msra.mxu0 0.0
        %977 = vmatprep.subr.mxu0 0.0
        %978 = vmatpush1.msra.mxu0 0.0
        %979 = vmatprep.subr.mxu0 0.0
        %980 = vmatpush1.msra.mxu0 0.0
        %981 = vmatprep.subr.mxu0 0.0
        %982 = vmatpush1.msra.mxu0 0.0
        %983 = vmatprep.subr.mxu0 0.0
        %984 = vmatpush1.msra.mxu0 0.0
        %985 = vmatprep.subr.mxu0 0.0
        %986 = vmatpush1.msra.mxu0 0.0
        %987 = vmatprep.subr.mxu0 0.0
        %988 = vmatpush1.msra.mxu0 0.0
        %989 = vmatprep.subr.mxu0 0.0
        %990 = vmatpush1.msra.mxu0 0.0
        %991 = vmatprep.subr.mxu0 0.0
        %992 = vmatpush1.msra.mxu0 0.0
        %993 = vmatprep.subr.mxu0 0.0
        %994 = vmatpush1.msra.mxu0 0.0
        %995 = vmatprep.subr.mxu0 0.0
        %996 = vmatpush1.msra.mxu0 0.0
        %997 = vmatprep.subr.mxu0 0.0
        %998 = vmatpush1.msra.mxu0 0.0
        %999 = vmatprep.subr.mxu0 0.0
        %1000 = vmatpush1.msra.mxu0 0.0
        %1001 = vmatprep.subr.mxu0 0.0
        %1002 = vmatpush1.msra.mxu0 0.0
        %1003 = vmatprep.subr.mxu0 0.0
        %1004 = vmatpush1.msra.mxu0 0.0
        %1005 = vmatprep.subr.mxu0 0.0
        %1006 = vmatpush1.msra.mxu0 0.0
        %1007 = vmatprep.subr.mxu0 0.0
        %1008 = vmatpush1.msra.mxu0 0.0
        %1009 = vmatprep.subr.mxu0 0.0
        %1010 = vmatpush1.msra.mxu0 0.0
        %1011 = vmatprep.subr.mxu0 0.0
        %1012 = vmatpush1.msra.mxu0 0.0
        %1013 = vmatprep.subr.mxu0 0.0
        %1014 = vmatpush1.msra.mxu0 0.0
        %1015 = vmatprep.subr.mxu0 0.0
        %1016 = vmatpush1.msra.mxu0 0.0
        %1017 = vmatprep.subr.mxu0 0.0
        %1018 = vmatpush1.msra.mxu0 0.0
        %1019 = vmatprep.mubr.f32.mxu0 0.0
        %1020 = vmatmul.mubr.f32.gmra.mrb[0].mxu0 %v953
        %v1021 = vpop.f32.mrb[0].mxu0
        %v1022 = vadd.f32 %v950, %v1021
        %v1023 = vpop.f32.mrb[0].mxu0
        %1024 = vdwg.mxu0
        %v1025 = vmax.f32 %v1022, 0.0
        %1027 = vset.pattern.permute.xlu0 0
        %1028 = vperm.xlu0 %1027, %v250
        %v1029 = vpop.permute.xlu0 %1028
        %v1031 = vmul.f32 %v1029, %v847
        %v1033 = vsel %vm466, %v251, 0
        %1035 = vmatprep.subr.mxu0 0.0
        %1036 = vmatpush1.msra.mxu0 %v1025
        %1037 = vmatprep.subr.mxu0 0.0
        %1038 = vmatpush1.msra.mxu0 0.0
        %1039 = vmatprep.subr.mxu0 0.0
        %1040 = vmatpush1.msra.mxu0 0.0
        %1041 = vmatprep.subr.mxu0 0.0
        %1042 = vmatpush1.msra.mxu0 0.0
        %1043 = vmatprep.subr.mxu0 0.0
        %1044 = vmatpush1.msra.mxu0 0.0
        %1045 = vmatprep.subr.mxu0 0.0
        %1046 = vmatpush1.msra.mxu0 0.0
        %1047 = vmatprep.subr.mxu0 0.0
        %1048 = vmatpush1.msra.mxu0 0.0
        %1049 = vmatprep.subr.mxu0 0.0
        %1050 = vmatpush1.msra.mxu0 0.0
        %1051 = vmatprep.subr.mxu0 0.0
        %1052 = vmatpush1.msra.mxu0 0.0
        %1053 = vmatprep.subr.mxu0 0.0
        %1054 = vmatpush1.msra.mxu0 0.0
        %1055 = vmatprep.subr.mxu0 0.0
        %1056 = vmatpush1.msra.mxu0 0.0
        %1057 = vmatprep.subr.mxu0 0.0
        %1058 = vmatpush1.msra.mxu0 0.0
        %1059 = vmatprep.subr.mxu0 0.0
        %1060 = vmatpush1.msra.mxu0 0.0
        %1061 = vmatprep.subr.mxu0 0.0
        %1062 = vmatpush1.msra.mxu0 0.0
        %1063 = vmatprep.subr.mxu0 0.0
        %1064 = vmatpush1.msra.mxu0 0.0
        %1065 = vmatprep.subr.mxu0 0.0
        %1066 = vmatpush1.msra.mxu0 0.0
        %1067 = vmatprep.subr.mxu0 0.0
        %1068 = vmatpush1.msra.mxu0 0.0
        %1069 = vmatprep.subr.mxu0 0.0
        %1070 = vmatpush1.msra.mxu0 0.0
        %1071 = vmatprep.subr.mxu0 0.0
        %1072 = vmatpush1.msra.mxu0 0.0
        %1073 = vmatprep.subr.mxu0 0.0
        %1074 = vmatpush1.msra.mxu0 0.0
        %1075 = vmatprep.subr.mxu0 0.0
        %1076 = vmatpush1.msra.mxu0 0.0
        %1077 = vmatprep.subr.mxu0 0.0
        %1078 = vmatpush1.msra.mxu0 0.0
        %1079 = vmatprep.subr.mxu0 0.0
        %1080 = vmatpush1.msra.mxu0 0.0
        %1081 = vmatprep.subr.mxu0 0.0
        %1082 = vmatpush1.msra.mxu0 0.0
        %1083 = vmatprep.subr.mxu0 0.0
        %1084 = vmatpush1.msra.mxu0 0.0
        %1085 = vmatprep.subr.mxu0 0.0
        %1086 = vmatpush1.msra.mxu0 0.0
        %1087 = vmatprep.subr.mxu0 0.0
        %1088 = vmatpush1.msra.mxu0 0.0
        %1089 = vmatprep.subr.mxu0 0.0
        %1090 = vmatpush1.msra.mxu0 0.0
        %1091 = vmatprep.subr.mxu0 0.0
        %1092 = vmatpush1.msra.mxu0 0.0
        %1093 = vmatprep.subr.mxu0 0.0
        %1094 = vmatpush1.msra.mxu0 0.0
        %1095 = vmatprep.subr.mxu0 0.0
        %1096 = vmatpush1.msra.mxu0 0.0
        %1097 = vmatprep.subr.mxu0 0.0
        %1098 = vmatpush1.msra.mxu0 0.0
        %1099 = vmatprep.mubr.f32.mxu0 0.0
        %1100 = vmatmul.mubr.f32.gmra.mrb[0].mxu0 %v1033
        %v1101 = vpop.f32.mrb[0].mxu0
        %v1102 = vadd.f32 0.0, %v1101
        %v1103 = vpop.f32.mrb[0].mxu0
        %1104 = vdwg.mxu0
        %v1105 = vadd.f32 %v1031, %v1102
        %1107 = vset.pattern.permute.xlu0 0
        %1108 = vperm.xlu0 %1107, %v252
        %v1109 = vpop.permute.xlu0 %1108
        %v1111 = vadd.f32 %v1105, %v1109
        %v1112 = vmax.f32 %v1111, 0.0
        %v1113 = vlaneseq
        %v1114 = vshrl.u32 %v1113, 7
        %v1115 = vsub.s32 0, %v1114
        %v1116 = vrot.slane %v254, %v1115
        %1117 = vxpose.xlu0.b32.start [1/16] %v1112, 128
        %1118 = vxpose.xlu0.b32.cont [2/16] 0.0, 128
        %1119 = vxpose.xlu0.b32.cont [3/16] 0.0, 128
        %1120 = vxpose.xlu0.b32.cont [4/16] 0.0, 128
        %1121 = vxpose.xlu0.b32.cont [5/16] 0.0, 128
        %1122 = vxpose.xlu0.b32.cont [6/16] 0.0, 128
        %1123 = vxpose.xlu0.b32.cont [7/16] 0.0, 128
        %1124 = vxpose.xlu0.b32.cont [8/16] 0.0, 128
        %1125 = vxpose.xlu0.b32.cont [9/16] 0.0, 128
        %1126 = vxpose.xlu0.b32.cont [10/16] 0.0, 128
        %1127 = vxpose.xlu0.b32.cont [11/16] 0.0, 128
        %1128 = vxpose.xlu0.b32.cont [12/16] 0.0, 128
        %1129 = vxpose.xlu0.b32.cont [13/16] 0.0, 128
        %1130 = vxpose.xlu0.b32.cont [14/16] 0.0, 128
        %1131 = vxpose.xlu0.b32.cont [15/16] 0.0, 128
        %1132 = vxpose.xlu0.b32.end [16/16] 0.0, 128
        %v1133 = vpop.trf.xlu0
        %v1134 = vpop.trf.xlu0
        %v1135 = vpop.trf.xlu0
        %v1136 = vpop.trf.xlu0
        %v1137 = vpop.trf.xlu0
        %v1138 = vpop.trf.xlu0
        %v1139 = vpop.trf.xlu0
        %v1140 = vpop.trf.xlu0
        %v1141 = vpop.trf.xlu0
        %v1142 = vpop.trf.xlu0
        %v1143 = vpop.trf.xlu0
        %v1144 = vpop.trf.xlu0
        %v1145 = vpop.trf.xlu0
        %v1146 = vpop.trf.xlu0
        %v1147 = vpop.trf.xlu0
        %v1148 = vpop.trf.xlu0
        %v1150 = vsel %vm640, %v1133, 0
        %v1153 = vsel %vm640, %v1134, 0
        %v1156 = vsel %vm640, %v1135, 0
        %v1159 = vsel %vm640, %v1136, 0
        %v1162 = vsel %vm640, %v1137, 0
        %v1165 = vsel %vm640, %v1138, 0
        %v1168 = vsel %vm640, %v1139, 0
        %v1171 = vsel %vm640, %v1140, 0
        %v1174 = vsel %vm640, %v253, 0
        %1176 = vmatprep.subr.mxu0 0.0
        %1177 = vmatpush1.xpose.msra.mxu0 %v1174
        %1178 = vmatprep.subr.mxu0 0.0
        %1179 = vmatpush1.xpose.msra.mxu0 0.0
        %1180 = vmatprep.subr.mxu0 0.0
        %1181 = vmatpush1.xpose.msra.mxu0 0.0
        %1182 = vmatprep.subr.mxu0 0.0
        %1183 = vmatpush1.xpose.msra.mxu0 0.0
        %1184 = vmatprep.subr.mxu0 0.0
        %1185 = vmatpush1.xpose.msra.mxu0 0.0
        %1186 = vmatprep.subr.mxu0 0.0
        %1187 = vmatpush1.xpose.msra.mxu0 0.0
        %1188 = vmatprep.subr.mxu0 0.0
        %1189 = vmatpush1.xpose.msra.mxu0 0.0
        %1190 = vmatprep.subr.mxu0 0.0
        %1191 = vmatpush1.xpose.msra.mxu0 0.0
        %1192 = vmatprep.subr.mxu0 0.0
        %1193 = vmatpush1.xpose.msra.mxu0 0.0
        %1194 = vmatprep.subr.mxu0 0.0
        %1195 = vmatpush1.xpose.msra.mxu0 0.0
        %1196 = vmatprep.subr.mxu0 0.0
        %1197 = vmatpush1.xpose.msra.mxu0 0.0
        %1198 = vmatprep.subr.mxu0 0.0
        %1199 = vmatpush1.xpose.msra.mxu0 0.0
        %1200 = vmatprep.subr.mxu0 0.0
        %1201 = vmatpush1.xpose.msra.mxu0 0.0
        %1202 = vmatprep.subr.mxu0 0.0
        %1203 = vmatpush1.xpose.msra.mxu0 0.0
        %1204 = vmatprep.subr.mxu0 0.0
        %1205 = vmatpush1.xpose.msra.mxu0 0.0
        %1206 = vmatprep.subr.mxu0 0.0
        %1207 = vmatpush1.xpose.msra.mxu0 0.0
        %1208 = vmatprep.subr.mxu0 0.0
        %1209 = vmatpush1.xpose.msra.mxu0 0.0
        %1210 = vmatprep.subr.mxu0 0.0
        %1211 = vmatpush1.xpose.msra.mxu0 0.0
        %1212 = vmatprep.subr.mxu0 0.0
        %1213 = vmatpush1.xpose.msra.mxu0 0.0
        %1214 = vmatprep.subr.mxu0 0.0
        %1215 = vmatpush1.xpose.msra.mxu0 0.0
        %1216 = vmatprep.subr.mxu0 0.0
        %1217 = vmatpush1.xpose.msra.mxu0 0.0
        %1218 = vmatprep.subr.mxu0 0.0
        %1219 = vmatpush1.xpose.msra.mxu0 0.0
        %1220 = vmatprep.subr.mxu0 0.0
        %1221 = vmatpush1.xpose.msra.mxu0 0.0
        %1222 = vmatprep.subr.mxu0 0.0
        %1223 = vmatpush1.xpose.msra.mxu0 0.0
        %1224 = vmatprep.subr.mxu0 0.0
        %1225 = vmatpush1.xpose.msra.mxu0 0.0
        %1226 = vmatprep.subr.mxu0 0.0
        %1227 = vmatpush1.xpose.msra.mxu0 0.0
        %1228 = vmatprep.subr.mxu0 0.0
        %1229 = vmatpush1.xpose.msra.mxu0 0.0
        %1230 = vmatprep.subr.mxu0 0.0
        %1231 = vmatpush1.xpose.msra.mxu0 0.0
        %1232 = vmatprep.subr.mxu0 0.0
        %1233 = vmatpush1.xpose.msra.mxu0 0.0
        %1234 = vmatprep.subr.mxu0 0.0
        %1235 = vmatpush1.xpose.msra.mxu0 0.0
        %1236 = vmatprep.subr.mxu0 0.0
        %1237 = vmatpush1.xpose.msra.mxu0 0.0
        %1238 = vmatprep.subr.mxu0 0.0
        %1239 = vmatpush1.xpose.msra.mxu0 0.0
        %1240 = vmatprep.mubr.f32.mxu0 0.0
        %1241 = vmatmul.mubr.f32.gmra.mrb[0].mxu0 %v1150
        %v1242 = vpop.f32.mrb[0].mxu0
        %v1243 = vadd.f32 %v1116, %v1242
        %v1244 = vpop.f32.mrb[0].mxu0
        %1245 = vmatprep.mubr.f32.mxu0 0.0
        %1246 = vmatmul.mubr.f32.gmra.mrb[0].mxu0 %v1153
        %v1247 = vpop.f32.mrb[0].mxu0
        %v1248 = vadd.f32 %v1116, %v1247
        %v1249 = vpop.f32.mrb[0].mxu0
        %1250 = vmatprep.mubr.f32.mxu0 0.0
        %1251 = vmatmul.mubr.f32.gmra.mrb[0].mxu0 %v1156
        %v1252 = vpop.f32.mrb[0].mxu0
        %v1253 = vadd.f32 %v1116, %v1252
        %v1254 = vpop.f32.mrb[0].mxu0
        %1255 = vmatprep.mubr.f32.mxu0 0.0
        %1256 = vmatmul.mubr.f32.gmra.mrb[0].mxu0 %v1159
        %v1257 = vpop.f32.mrb[0].mxu0
        %v1258 = vadd.f32 %v1116, %v1257
        %v1259 = vpop.f32.mrb[0].mxu0
        %1260 = vmatprep.mubr.f32.mxu0 0.0
        %1261 = vmatmul.mubr.f32.gmra.mrb[0].mxu0 %v1162
        %v1262 = vpop.f32.mrb[0].mxu0
        %v1263 = vadd.f32 %v1116, %v1262
        %v1264 = vpop.f32.mrb[0].mxu0
        %1265 = vmatprep.mubr.f32.mxu0 0.0
        %1266 = vmatmul.mubr.f32.gmra.mrb[0].mxu0 %v1165
        %v1267 = vpop.f32.mrb[0].mxu0
        %v1268 = vadd.f32 %v1116, %v1267
        %v1269 = vpop.f32.mrb[0].mxu0
        %1270 = vmatprep.mubr.f32.mxu0 0.0
        %1271 = vmatmul.mubr.f32.gmra.mrb[0].mxu0 %v1168
        %v1272 = vpop.f32.mrb[0].mxu0
        %v1273 = vadd.f32 %v1116, %v1272
        %v1274 = vpop.f32.mrb[0].mxu0
        %1275 = vmatprep.mubr.f32.mxu0 0.0
        %1276 = vmatmul.mubr.f32.gmra.mrb[0].mxu0 %v1171
        %v1277 = vpop.f32.mrb[0].mxu0
        %v1278 = vadd.f32 %v1116, %v1277
        %v1279 = vpop.f32.mrb[0].mxu0
        %1280 = vdwg.mxu0
        %v1281 = vxor.u32 %v1243, 2147483648
        %v1282 = vxor.u32 %v1248, 2147483648
        %v1283 = vxor.u32 %v1253, 2147483648
        %v1284 = vxor.u32 %v1258, 2147483648
        %v1285 = vxor.u32 %v1263, 2147483648
        %v1286 = vxor.u32 %v1268, 2147483648
        %v1287 = vxor.u32 %v1273, 2147483648
        %v1288 = vxor.u32 %v1278, 2147483648
        %v1289 = vmul.f32 %v1281, 1.442695
        %v1290 = vpow.pop %v1289
        %v1291 = vmul.f32 %v1282, 1.442695
        %v1292 = vpow.pop %v1291
        %v1293 = vmul.f32 %v1283, 1.442695
        %v1294 = vpow.pop %v1293
        %v1295 = vmul.f32 %v1284, 1.442695
        %v1296 = vpow.pop %v1295
        %v1297 = vmul.f32 %v1285, 1.442695
        %v1298 = vpow.pop %v1297
        %v1299 = vmul.f32 %v1286, 1.442695
        %v1300 = vpow.pop %v1299
        %v1301 = vmul.f32 %v1287, 1.442695
        %v1302 = vpow.pop %v1301
        %v1303 = vmul.f32 %v1288, 1.442695
        %v1304 = vpow.pop %v1303
        %v1305 = vadd.f32 %v1290, 1.0
        %v1306 = vadd.f32 %v1292, 1.0
        %v1307 = vadd.f32 %v1294, 1.0
        %v1308 = vadd.f32 %v1296, 1.0
        %v1309 = vadd.f32 %v1298, 1.0
        %v1310 = vadd.f32 %v1300, 1.0
        %v1311 = vadd.f32 %v1302, 1.0
        %v1312 = vadd.f32 %v1304, 1.0
        %v1313 = vrcp.pop %v1305
        %v1314 = vmul.f32 1.0, %v1313
        %v1315 = vrcp.pop %v1306
        %v1316 = vmul.f32 1.0, %v1315
        %v1317 = vrcp.pop %v1307
        %v1318 = vmul.f32 1.0, %v1317
        %v1319 = vrcp.pop %v1308
        %v1320 = vmul.f32 1.0, %v1319
        %v1321 = vrcp.pop %v1309
        %v1322 = vmul.f32 1.0, %v1321
        %v1323 = vrcp.pop %v1310
        %v1324 = vmul.f32 1.0, %v1323
        %v1325 = vrcp.pop %v1311
        %v1326 = vmul.f32 1.0, %v1325
        %v1327 = vrcp.pop %v1312
        %v1328 = vmul.f32 1.0, %v1327
        %1330 = vset.pattern.permute.xlu0 0
        %1331 = vperm.xlu0 %1330, %v1314
        %v1332 = vpop.permute.xlu0 %1331
        %1335 = vset.pattern.permute.xlu0 0
        %1336 = vperm.xlu0 %1335, %v1316
        %v1337 = vpop.permute.xlu0 %1336
        %1340 = vset.pattern.permute.xlu0 0
        %1341 = vperm.xlu0 %1340, %v1318
        %v1342 = vpop.permute.xlu0 %1341
        %1345 = vset.pattern.permute.xlu0 0
        %1346 = vperm.xlu0 %1345, %v1320
        %v1347 = vpop.permute.xlu0 %1346
        %1350 = vset.pattern.permute.xlu0 0
        %1351 = vperm.xlu0 %1350, %v1322
        %v1352 = vpop.permute.xlu0 %1351
        %1355 = vset.pattern.permute.xlu0 0
        %1356 = vperm.xlu0 %1355, %v1324
        %v1357 = vpop.permute.xlu0 %1356
        %1360 = vset.pattern.permute.xlu0 0
        %1361 = vperm.xlu0 %1360, %v1326
        %v1362 = vpop.permute.xlu0 %1361
        %1365 = vset.pattern.permute.xlu0 0
        %1366 = vperm.xlu0 %1365, %v1328
        %v1367 = vpop.permute.xlu0 %1366
        %v1369 = vmul.f32 %v1332, %v736
        %v1370 = vmul.f32 %v1337, %v737
        %v1371 = vmul.f32 %v1342, %v738
        %v1372 = vmul.f32 %v1347, %v739
        %v1373 = vmul.f32 %v1352, %v740
        %v1374 = vmul.f32 %v1357, %v741
        %v1375 = vmul.f32 %v1362, %v742
        %v1376 = vmul.f32 %v1367, %v743
        %1378 = vrot.lane.b32.xlu0 %v369, 64
        %v1379 = vpop.permute.xlu0 %1378
        %v1381 = vsel %vm302, %v1379, 0
        %1383 = vmatprep.subr.bf16.mxu0 0
        %1384 = vmatpush1.bf16.xpose.msra.mxu0 %v1381
        %1385 = vmatprep.subr.bf16.mxu0 0
        %1386 = vmatpush1.bf16.xpose.msra.mxu0 0
        %1387 = vmatprep.subr.bf16.mxu0 0
        %1388 = vmatpush1.bf16.xpose.msra.mxu0 0
        %1389 = vmatprep.subr.bf16.mxu0 0
        %1390 = vmatpush1.bf16.xpose.msra.mxu0 0
        %1391 = vmatprep.subr.bf16.mxu0 0
        %1392 = vmatpush1.bf16.xpose.msra.mxu0 0
        %1393 = vmatprep.subr.bf16.mxu0 0
        %1394 = vmatpush1.bf16.xpose.msra.mxu0 0
        %1395 = vmatprep.subr.bf16.mxu0 0
        %1396 = vmatpush1.bf16.xpose.msra.mxu0 0
        %1397 = vmatprep.subr.bf16.mxu0 0
        %1398 = vmatpush1.bf16.xpose.msra.mxu0 0
        %1399 = vmatprep.subr.bf16.mxu0 0
        %1400 = vmatpush1.bf16.xpose.msra.mxu0 0
        %1401 = vmatprep.subr.bf16.mxu0 0
        %1402 = vmatpush1.bf16.xpose.msra.mxu0 0
        %1403 = vmatprep.subr.bf16.mxu0 0
        %1404 = vmatpush1.bf16.xpose.msra.mxu0 0
        %1405 = vmatprep.subr.bf16.mxu0 0
        %1406 = vmatpush1.bf16.xpose.msra.mxu0 0
        %1407 = vmatprep.subr.bf16.mxu0 0
        %1408 = vmatpush1.bf16.xpose.msra.mxu0 0
        %1409 = vmatprep.subr.bf16.mxu0 0
        %1410 = vmatpush1.bf16.xpose.msra.mxu0 0
        %1411 = vmatprep.subr.bf16.mxu0 0
        %1412 = vmatpush1.bf16.xpose.msra.mxu0 0
        %1413 = vmatprep.subr.bf16.mxu0 0
        %1414 = vmatpush1.bf16.xpose.msra.mxu0 0
        %1415 = vmatprep.mubr.bf16.mxu0 0
        %1416 = vmatmul.mubr.bf16.gmra.mrb[0].mxu0 %v371
        %v1417 = vpop.f32.mrb[0].mxu0
        %v1418 = vadd.f32 0.0, %v1417
        %v1419 = vpop.f32.mrb[0].mxu0
        %v1420 = vpop.f32.mrb[0].mxu0
        %v1421 = vpop.f32.mrb[0].mxu0
        %1422 = vdwg.mxu0
        %1424 = vrot.lane.b32.xlu0 %v368, 64
        %v1425 = vpop.permute.xlu0 %1424
        %v1427 = vsel %vm302, %v1425, 0
        %1429 = vmatprep.subr.bf16.mxu0 0
        %1430 = vmatpush1.bf16.xpose.msra.mxu0 %v1427
        %1431 = vmatprep.subr.bf16.mxu0 0
        %1432 = vmatpush1.bf16.xpose.msra.mxu0 0
        %1433 = vmatprep.subr.bf16.mxu0 0
        %1434 = vmatpush1.bf16.xpose.msra.mxu0 0
        %1435 = vmatprep.subr.bf16.mxu0 0
        %1436 = vmatpush1.bf16.xpose.msra.mxu0 0
        %1437 = vmatprep.subr.bf16.mxu0 0
        %1438 = vmatpush1.bf16.xpose.msra.mxu0 0
        %1439 = vmatprep.subr.bf16.mxu0 0
        %1440 = vmatpush1.bf16.xpose.msra.mxu0 0
        %1441 = vmatprep.subr.bf16.mxu0 0
        %1442 = vmatpush1.bf16.xpose.msra.mxu0 0
        %1443 = vmatprep.subr.bf16.mxu0 0
        %1444 = vmatpush1.bf16.xpose.msra.mxu0 0
        %1445 = vmatprep.subr.bf16.mxu0 0
        %1446 = vmatpush1.bf16.xpose.msra.mxu0 0
        %1447 = vmatprep.subr.bf16.mxu0 0
        %1448 = vmatpush1.bf16.xpose.msra.mxu0 0
        %1449 = vmatprep.subr.bf16.mxu0 0
        %1450 = vmatpush1.bf16.xpose.msra.mxu0 0
        %1451 = vmatprep.subr.bf16.mxu0 0
        %1452 = vmatpush1.bf16.xpose.msra.mxu0 0
        %1453 = vmatprep.subr.bf16.mxu0 0
        %1454 = vmatpush1.bf16.xpose.msra.mxu0 0
        %1455 = vmatprep.subr.bf16.mxu0 0
        %1456 = vmatpush1.bf16.xpose.msra.mxu0 0
        %1457 = vmatprep.subr.bf16.mxu0 0
        %1458 = vmatpush1.bf16.xpose.msra.mxu0 0
        %1459 = vmatprep.subr.bf16.mxu0 0
        %1460 = vmatpush1.bf16.xpose.msra.mxu0 0
        %1461 = vmatprep.mubr.bf16.mxu0 0
        %1462 = vmatmul.mubr.bf16.gmra.mrb[0].mxu0 %v417
        %v1463 = vpop.f32.mrb[0].mxu0
        %v1464 = vadd.f32 0.0, %v1463
        %v1465 = vpop.f32.mrb[0].mxu0
        %v1466 = vpop.f32.mrb[0].mxu0
        %v1467 = vpop.f32.mrb[0].mxu0
        %1468 = vdwg.mxu0
        %1470 = vrot.lane.b32.xlu0 %v1464, 8
        %v1471 = vpop.permute.xlu0 %1470
        %v1473 = vsel %vm466, %v1418, %v1471
        %1476 = vrot.lane.b32.xlu0 %v357, 64
        %v1477 = vpop.permute.xlu0 %1476
        %1478 = vrot.lane.b32.xlu0 %v358, 64
        %v1479 = vpop.permute.xlu0 %1478
        %v1483 = vsel %vm473, %v1473, 0
        %1485 = vmatprep.subr.mxu0 0.0
        %1486 = vmatpush1.msra.mxu0 %v1477
        %1487 = vmatprep.subr.mxu0 0.0
        %1488 = vmatpush1.msra.mxu0 %v1479
        %1489 = vmatprep.subr.mxu0 0.0
        %1490 = vmatpush1.msra.mxu0 0.0
        %1491 = vmatprep.subr.mxu0 0.0
        %1492 = vmatpush1.msra.mxu0 0.0
        %1493 = vmatprep.subr.mxu0 0.0
        %1494 = vmatpush1.msra.mxu0 0.0
        %1495 = vmatprep.subr.mxu0 0.0
        %1496 = vmatpush1.msra.mxu0 0.0
        %1497 = vmatprep.subr.mxu0 0.0
        %1498 = vmatpush1.msra.mxu0 0.0
        %1499 = vmatprep.subr.mxu0 0.0
        %1500 = vmatpush1.msra.mxu0 0.0
        %1501 = vmatprep.subr.mxu0 0.0
        %1502 = vmatpush1.msra.mxu0 0.0
        %1503 = vmatprep.subr.mxu0 0.0
        %1504 = vmatpush1.msra.mxu0 0.0
        %1505 = vmatprep.subr.mxu0 0.0
        %1506 = vmatpush1.msra.mxu0 0.0
        %1507 = vmatprep.subr.mxu0 0.0
        %1508 = vmatpush1.msra.mxu0 0.0
        %1509 = vmatprep.subr.mxu0 0.0
        %1510 = vmatpush1.msra.mxu0 0.0
        %1511 = vmatprep.subr.mxu0 0.0
        %1512 = vmatpush1.msra.mxu0 0.0
        %1513 = vmatprep.subr.mxu0 0.0
        %1514 = vmatpush1.msra.mxu0 0.0
        %1515 = vmatprep.subr.mxu0 0.0
        %1516 = vmatpush1.msra.mxu0 0.0
        %1517 = vmatprep.subr.mxu0 0.0
        %1518 = vmatpush1.msra.mxu0 0.0
        %1519 = vmatprep.subr.mxu0 0.0
        %1520 = vmatpush1.msra.mxu0 0.0
        %1521 = vmatprep.subr.mxu0 0.0
        %1522 = vmatpush1.msra.mxu0 0.0
        %1523 = vmatprep.subr.mxu0 0.0
        %1524 = vmatpush1.msra.mxu0 0.0
        %1525 = vmatprep.subr.mxu0 0.0
        %1526 = vmatpush1.msra.mxu0 0.0
        %1527 = vmatprep.subr.mxu0 0.0
        %1528 = vmatpush1.msra.mxu0 0.0
        %1529 = vmatprep.subr.mxu0 0.0
        %1530 = vmatpush1.msra.mxu0 0.0
        %1531 = vmatprep.subr.mxu0 0.0
        %1532 = vmatpush1.msra.mxu0 0.0
        %1533 = vmatprep.subr.mxu0 0.0
        %1534 = vmatpush1.msra.mxu0 0.0
        %1535 = vmatprep.subr.mxu0 0.0
        %1536 = vmatpush1.msra.mxu0 0.0
        %1537 = vmatprep.subr.mxu0 0.0
        %1538 = vmatpush1.msra.mxu0 0.0
        %1539 = vmatprep.subr.mxu0 0.0
        %1540 = vmatpush1.msra.mxu0 0.0
        %1541 = vmatprep.subr.mxu0 0.0
        %1542 = vmatpush1.msra.mxu0 0.0
        %1543 = vmatprep.subr.mxu0 0.0
        %1544 = vmatpush1.msra.mxu0 0.0
        %1545 = vmatprep.subr.mxu0 0.0
        %1546 = vmatpush1.msra.mxu0 0.0
        %1547 = vmatprep.subr.mxu0 0.0
        %1548 = vmatpush1.msra.mxu0 0.0
        %1549 = vmatprep.mubr.f32.mxu0 0.0
        %1550 = vmatmul.mubr.f32.gmra.mrb[0].mxu0 %v1483
        %v1551 = vpop.f32.mrb[0].mxu0
        %v1552 = vadd.f32 %v471, %v1551
        %v1553 = vpop.f32.mrb[0].mxu0
        %1554 = vdwg.mxu0
        %v1555 = vmax.f32 %v1552, 0.0
        %1556 = vmatprep.subr.mxu0 0.0
        %1557 = vmatpush1.msra.mxu0 %v1555
        %1558 = vmatprep.subr.mxu0 0.0
        %1559 = vmatpush1.msra.mxu0 0.0
        %1560 = vmatprep.subr.mxu0 0.0
        %1561 = vmatpush1.msra.mxu0 0.0
        %1562 = vmatprep.subr.mxu0 0.0
        %1563 = vmatpush1.msra.mxu0 0.0
        %1564 = vmatprep.subr.mxu0 0.0
        %1565 = vmatpush1.msra.mxu0 0.0
        %1566 = vmatprep.subr.mxu0 0.0
        %1567 = vmatpush1.msra.mxu0 0.0
        %1568 = vmatprep.subr.mxu0 0.0
        %1569 = vmatpush1.msra.mxu0 0.0
        %1570 = vmatprep.subr.mxu0 0.0
        %1571 = vmatpush1.msra.mxu0 0.0
        %1572 = vmatprep.subr.mxu0 0.0
        %1573 = vmatpush1.msra.mxu0 0.0
        %1574 = vmatprep.subr.mxu0 0.0
        %1575 = vmatpush1.msra.mxu0 0.0
        %1576 = vmatprep.subr.mxu0 0.0
        %1577 = vmatpush1.msra.mxu0 0.0
        %1578 = vmatprep.subr.mxu0 0.0
        %1579 = vmatpush1.msra.mxu0 0.0
        %1580 = vmatprep.subr.mxu0 0.0
        %1581 = vmatpush1.msra.mxu0 0.0
        %1582 = vmatprep.subr.mxu0 0.0
        %1583 = vmatpush1.msra.mxu0 0.0
        %1584 = vmatprep.subr.mxu0 0.0
        %1585 = vmatpush1.msra.mxu0 0.0
        %1586 = vmatprep.subr.mxu0 0.0
        %1587 = vmatpush1.msra.mxu0 0.0
        %1588 = vmatprep.subr.mxu0 0.0
        %1589 = vmatpush1.msra.mxu0 0.0
        %1590 = vmatprep.subr.mxu0 0.0
        %1591 = vmatpush1.msra.mxu0 0.0
        %1592 = vmatprep.subr.mxu0 0.0
        %1593 = vmatpush1.msra.mxu0 0.0
        %1594 = vmatprep.subr.mxu0 0.0
        %1595 = vmatpush1.msra.mxu0 0.0
        %1596 = vmatprep.subr.mxu0 0.0
        %1597 = vmatpush1.msra.mxu0 0.0
        %1598 = vmatprep.subr.mxu0 0.0
        %1599 = vmatpush1.msra.mxu0 0.0
        %1600 = vmatprep.subr.mxu0 0.0
        %1601 = vmatpush1.msra.mxu0 0.0
        %1602 = vmatprep.subr.mxu0 0.0
        %1603 = vmatpush1.msra.mxu0 0.0
        %1604 = vmatprep.subr.mxu0 0.0
        %1605 = vmatpush1.msra.mxu0 0.0
        %1606 = vmatprep.subr.mxu0 0.0
        %1607 = vmatpush1.msra.mxu0 0.0
        %1608 = vmatprep.subr.mxu0 0.0
        %1609 = vmatpush1.msra.mxu0 0.0
        %1610 = vmatprep.subr.mxu0 0.0
        %1611 = vmatpush1.msra.mxu0 0.0
        %1612 = vmatprep.subr.mxu0 0.0
        %1613 = vmatpush1.msra.mxu0 0.0
        %1614 = vmatprep.subr.mxu0 0.0
        %1615 = vmatpush1.msra.mxu0 0.0
        %1616 = vmatprep.subr.mxu0 0.0
        %1617 = vmatpush1.msra.mxu0 0.0
        %1618 = vmatprep.subr.mxu0 0.0
        %1619 = vmatpush1.msra.mxu0 0.0
        %1620 = vmatprep.mubr.f32.mxu0 0.0
        %1621 = vmatmul.mubr.f32.gmra.mrb[0].mxu0 %v555
        %v1622 = vpop.f32.mrb[0].mxu0
        %v1623 = vadd.f32 0.0, %v1622
        %v1624 = vpop.f32.mrb[0].mxu0
        %1625 = vdwg.mxu0
        %1627 = vrot.lane.b32.xlu0 %v1623, 64
        %v1628 = vpop.permute.xlu0 %1627
        %v1630 = vadd.f32 %v553, %v1628
        %v1631 = vadd.f32 %v1630, %v631
        %v1632 = vmax.f32 %v1631, 0.0
        %1634 = vrot.lane.b32.xlu0 %v1632, 64
        %v1635 = vpop.permute.xlu0 %1634
        %v1636 = vsel %vm644, %v1635, 0
        %1638 = vmatprep.subr.mxu0 0.0
        %1639 = vmatpush1.msra.mxu0 %v1636
        %1640 = vmatprep.subr.mxu0 0.0
        %1641 = vmatpush1.msra.mxu0 0.0
        %1642 = vmatprep.subr.mxu0 0.0
        %1643 = vmatpush1.msra.mxu0 0.0
        %1644 = vmatprep.subr.mxu0 0.0
        %1645 = vmatpush1.msra.mxu0 0.0
        %1646 = vmatprep.subr.mxu0 0.0
        %1647 = vmatpush1.msra.mxu0 0.0
        %1648 = vmatprep.subr.mxu0 0.0
        %1649 = vmatpush1.msra.mxu0 0.0
        %1650 = vmatprep.subr.mxu0 0.0
        %1651 = vmatpush1.msra.mxu0 0.0
        %1652 = vmatprep.subr.mxu0 0.0
        %1653 = vmatpush1.msra.mxu0 0.0
        %1654 = vmatprep.subr.mxu0 0.0
        %1655 = vmatpush1.msra.mxu0 0.0
        %1656 = vmatprep.subr.mxu0 0.0
        %1657 = vmatpush1.msra.mxu0 0.0
        %1658 = vmatprep.subr.mxu0 0.0
        %1659 = vmatpush1.msra.mxu0 0.0
        %1660 = vmatprep.subr.mxu0 0.0
        %1661 = vmatpush1.msra.mxu0 0.0
        %1662 = vmatprep.subr.mxu0 0.0
        %1663 = vmatpush1.msra.mxu0 0.0
        %1664 = vmatprep.subr.mxu0 0.0
        %1665 = vmatpush1.msra.mxu0 0.0
        %1666 = vmatprep.subr.mxu0 0.0
        %1667 = vmatpush1.msra.mxu0 0.0
        %1668 = vmatprep.subr.mxu0 0.0
        %1669 = vmatpush1.msra.mxu0 0.0
        %1670 = vmatprep.subr.mxu0 0.0
        %1671 = vmatpush1.msra.mxu0 0.0
        %1672 = vmatprep.subr.mxu0 0.0
        %1673 = vmatpush1.msra.mxu0 0.0
        %1674 = vmatprep.subr.mxu0 0.0
        %1675 = vmatpush1.msra.mxu0 0.0
        %1676 = vmatprep.subr.mxu0 0.0
        %1677 = vmatpush1.msra.mxu0 0.0
        %1678 = vmatprep.subr.mxu0 0.0
        %1679 = vmatpush1.msra.mxu0 0.0
        %1680 = vmatprep.subr.mxu0 0.0
        %1681 = vmatpush1.msra.mxu0 0.0
        %1682 = vmatprep.subr.mxu0 0.0
        %1683 = vmatpush1.msra.mxu0 0.0
        %1684 = vmatprep.subr.mxu0 0.0
        %1685 = vmatpush1.msra.mxu0 0.0
        %1686 = vmatprep.subr.mxu0 0.0
        %1687 = vmatpush1.msra.mxu0 0.0
        %1688 = vmatprep.subr.mxu0 0.0
        %1689 = vmatpush1.msra.mxu0 0.0
        %1690 = vmatprep.subr.mxu0 0.0
        %1691 = vmatpush1.msra.mxu0 0.0
        %1692 = vmatprep.subr.mxu0 0.0
        %1693 = vmatpush1.msra.mxu0 0.0
        %1694 = vmatprep.subr.mxu0 0.0
        %1695 = vmatpush1.msra.mxu0 0.0
        %1696 = vmatprep.subr.mxu0 0.0
        %1697 = vmatpush1.msra.mxu0 0.0
        %1698 = vmatprep.subr.mxu0 0.0
        %1699 = vmatpush1.msra.mxu0 0.0
        %1700 = vmatprep.subr.mxu0 0.0
        %1701 = vmatpush1.msra.mxu0 0.0
        %1702 = vmatprep.mubr.f32.mxu0 0.0
        %1703 = vmatmul.mubr.f32.gmra.mrb[0].mxu0 %v642
        %v1704 = vpop.f32.mrb[0].mxu0
        %v1705 = vadd.f32 %v638, %v1704
        %v1706 = vpop.f32.mrb[0].mxu0
        %1707 = vdwg.mxu0
        %v1708 = vxor.u32 %v1705, 2147483648
        %v1709 = vmul.f32 %v1708, 1.442695
        %v1710 = vpow.pop %v1709
        %v1711 = vadd.f32 %v1710, 1.0
        %v1712 = vrcp.pop %v1711
        %v1713 = vmul.f32 1.0, %v1712
        %v1714 = vlaneseq
        %v1715 = vshrl.u32 %v1714, 7
        %v1716 = vsub.s32 0, %v1715
        %v1717 = vrot.slane %v1713, %v1716
        %1726 = vrot.lane.b32.xlu0 %v724, 64
        %v1727 = vpop.permute.xlu0 %1726
        %1728 = vrot.lane.b32.xlu0 %v725, 64
        %v1729 = vpop.permute.xlu0 %1728
        %1730 = vrot.lane.b32.xlu0 %v726, 64
        %v1731 = vpop.permute.xlu0 %1730
        %1732 = vrot.lane.b32.xlu0 %v727, 64
        %v1733 = vpop.permute.xlu0 %1732
        %1734 = vrot.lane.b32.xlu0 %v728, 64
        %v1735 = vpop.permute.xlu0 %1734
        %1736 = vrot.lane.b32.xlu0 %v729, 64
        %v1737 = vpop.permute.xlu0 %1736
        %1738 = vrot.lane.b32.xlu0 %v730, 64
        %v1739 = vpop.permute.xlu0 %1738
        %1740 = vrot.lane.b32.xlu0 %v731, 64
        %v1741 = vpop.permute.xlu0 %1740
        %v1750 = vmul.f32 %v1717, %v1727
        %v1751 = vmul.f32 %v1717, %v1729
        %v1752 = vmul.f32 %v1717, %v1731
        %v1753 = vmul.f32 %v1717, %v1733
        %v1754 = vmul.f32 %v1717, %v1735
        %v1755 = vmul.f32 %v1717, %v1737
        %v1756 = vmul.f32 %v1717, %v1739
        %v1757 = vmul.f32 %v1717, %v1741
        %v1758 = vpack.c.bf16 %v1751, %v1750
        %v1759 = vpack.c.bf16 %v1753, %v1752
        %v1760 = vpack.c.bf16 %v1755, %v1754
        %v1761 = vpack.c.bf16 %v1757, %v1756
        %v1763 = vsel %vm302, %v1758, 0
        %v1766 = vsel %vm302, %v1759, 0
        %v1769 = vsel %vm302, %v1760, 0
        %v1772 = vsel %vm302, %v1761, 0
        %1774 = vmatprep.subr.bf16.mxu0 0
        %1775 = vmatpush1.bf16.xpose.msra.mxu0 %v1763
        %1776 = vmatprep.subr.bf16.mxu0 0
        %1777 = vmatpush1.bf16.xpose.msra.mxu0 %v1766
        %1778 = vmatprep.subr.bf16.mxu0 0
        %1779 = vmatpush1.bf16.xpose.msra.mxu0 %v1769
        %1780 = vmatprep.subr.bf16.mxu0 0
        %1781 = vmatpush1.bf16.xpose.msra.mxu0 %v1772
        %1782 = vmatprep.subr.bf16.mxu0 0
        %1783 = vmatpush1.bf16.xpose.msra.mxu0 0
        %1784 = vmatprep.subr.bf16.mxu0 0
        %1785 = vmatpush1.bf16.xpose.msra.mxu0 0
        %1786 = vmatprep.subr.bf16.mxu0 0
        %1787 = vmatpush1.bf16.xpose.msra.mxu0 0
        %1788 = vmatprep.subr.bf16.mxu0 0
        %1789 = vmatpush1.bf16.xpose.msra.mxu0 0
        %1790 = vmatprep.subr.bf16.mxu0 0
        %1791 = vmatpush1.bf16.xpose.msra.mxu0 0
        %1792 = vmatprep.subr.bf16.mxu0 0
        %1793 = vmatpush1.bf16.xpose.msra.mxu0 0
        %1794 = vmatprep.subr.bf16.mxu0 0
        %1795 = vmatpush1.bf16.xpose.msra.mxu0 0
        %1796 = vmatprep.subr.bf16.mxu0 0
        %1797 = vmatpush1.bf16.xpose.msra.mxu0 0
        %1798 = vmatprep.subr.bf16.mxu0 0
        %1799 = vmatpush1.bf16.xpose.msra.mxu0 0
        %1800 = vmatprep.subr.bf16.mxu0 0
        %1801 = vmatpush1.bf16.xpose.msra.mxu0 0
        %1802 = vmatprep.subr.bf16.mxu0 0
        %1803 = vmatpush1.bf16.xpose.msra.mxu0 0
        %1804 = vmatprep.subr.bf16.mxu0 0
        %1805 = vmatpush1.bf16.xpose.msra.mxu0 0
        %1806 = vmatprep.mubr.bf16.mxu0 0
        %1807 = vmatmul.mubr.bf16.gmra.mrb[0].mxu0 %v772
        %v1808 = vpop.f32.mrb[0].mxu0
        %v1809 = vadd.f32 %v751, %v1808
        %v1810 = vpop.f32.mrb[0].mxu0
        %v1811 = vpop.f32.mrb[0].mxu0
        %v1812 = vadd.f32 %v756, %v1811
        %v1813 = vpop.f32.mrb[0].mxu0
        %1814 = vmatprep.mubr.bf16.mxu0 0
        %1815 = vmatmul.mubr.bf16.gmra.mrb[0].mxu0 %v775
        %v1816 = vpop.f32.mrb[0].mxu0
        %v1817 = vadd.f32 %v761, %v1816
        %v1818 = vpop.f32.mrb[0].mxu0
        %v1819 = vpop.f32.mrb[0].mxu0
        %v1820 = vpop.f32.mrb[0].mxu0
        %1821 = vdwg.mxu0
        %v1822 = vmax.f32 %v1809, 0.0
        %v1823 = vmax.f32 %v1812, 0.0
        %v1824 = vmax.f32 %v1817, 0.0
        %v1825 = vsel %vm302, %v1824, 0.0
        %v1826 = vrot.slane %v1825, 4
        %v1827 = vadd.f32 %v1825, %v1826
        %v1828 = vrot.slane %v1827, 2
        %v1829 = vadd.f32 %v1827, %v1828
        %v1830 = vrot.slane %v1829, 1
        %v1831 = vadd.f32 %v1829, %v1830
        %v1832 = vmul.f32 %v1831, %v366
        %v1833 = vpack.c.bf16 %v1822, %v1822
        %v1834 = vpack.c.bf16 %v1823, %v1823
        %v1836 = vsel %vm302, %v1834, 0
        %1838 = vmatprep.subr.bf16.mxu0 0
        %1839 = vmatpush1.bf16.xpose.msra.mxu0 %v1836
        %1840 = vmatprep.subr.bf16.mxu0 0
        %1841 = vmatpush1.bf16.xpose.msra.mxu0 0
        %1842 = vmatprep.subr.bf16.mxu0 0
        %1843 = vmatpush1.bf16.xpose.msra.mxu0 0
        %1844 = vmatprep.subr.bf16.mxu0 0
        %1845 = vmatpush1.bf16.xpose.msra.mxu0 0
        %1846 = vmatprep.subr.bf16.mxu0 0
        %1847 = vmatpush1.bf16.xpose.msra.mxu0 0
        %1848 = vmatprep.subr.bf16.mxu0 0
        %1849 = vmatpush1.bf16.xpose.msra.mxu0 0
        %1850 = vmatprep.subr.bf16.mxu0 0
        %1851 = vmatpush1.bf16.xpose.msra.mxu0 0
        %1852 = vmatprep.subr.bf16.mxu0 0
        %1853 = vmatpush1.bf16.xpose.msra.mxu0 0
        %1854 = vmatprep.subr.bf16.mxu0 0
        %1855 = vmatpush1.bf16.xpose.msra.mxu0 0
        %1856 = vmatprep.subr.bf16.mxu0 0
        %1857 = vmatpush1.bf16.xpose.msra.mxu0 0
        %1858 = vmatprep.subr.bf16.mxu0 0
        %1859 = vmatpush1.bf16.xpose.msra.mxu0 0
        %1860 = vmatprep.subr.bf16.mxu0 0
        %1861 = vmatpush1.bf16.xpose.msra.mxu0 0
        %1862 = vmatprep.subr.bf16.mxu0 0
        %1863 = vmatpush1.bf16.xpose.msra.mxu0 0
        %1864 = vmatprep.subr.bf16.mxu0 0
        %1865 = vmatpush1.bf16.xpose.msra.mxu0 0
        %1866 = vmatprep.subr.bf16.mxu0 0
        %1867 = vmatpush1.bf16.xpose.msra.mxu0 0
        %1868 = vmatprep.subr.bf16.mxu0 0
        %1869 = vmatpush1.bf16.xpose.msra.mxu0 0
        %1870 = vmatprep.mubr.bf16.mxu0 0
        %1871 = vmatmul.mubr.bf16.gmra.mrb[0].mxu0 %v851
        %v1872 = vpop.f32.mrb[0].mxu0
        %v1873 = vadd.f32 0.0, %v1872
        %v1874 = vpop.f32.mrb[0].mxu0
        %v1875 = vpop.f32.mrb[0].mxu0
        %v1876 = vpop.f32.mrb[0].mxu0
        %1877 = vdwg.mxu0
        %v1879 = vsel %vm302, %v1833, 0
        %1881 = vmatprep.subr.bf16.mxu0 0
        %1882 = vmatpush1.bf16.xpose.msra.mxu0 %v1879
        %1883 = vmatprep.subr.bf16.mxu0 0
        %1884 = vmatpush1.bf16.xpose.msra.mxu0 0
        %1885 = vmatprep.subr.bf16.mxu0 0
        %1886 = vmatpush1.bf16.xpose.msra.mxu0 0
        %1887 = vmatprep.subr.bf16.mxu0 0
        %1888 = vmatpush1.bf16.xpose.msra.mxu0 0
        %1889 = vmatprep.subr.bf16.mxu0 0
        %1890 = vmatpush1.bf16.xpose.msra.mxu0 0
        %1891 = vmatprep.subr.bf16.mxu0 0
        %1892 = vmatpush1.bf16.xpose.msra.mxu0 0
        %1893 = vmatprep.subr.bf16.mxu0 0
        %1894 = vmatpush1.bf16.xpose.msra.mxu0 0
        %1895 = vmatprep.subr.bf16.mxu0 0
        %1896 = vmatpush1.bf16.xpose.msra.mxu0 0
        %1897 = vmatprep.subr.bf16.mxu0 0
        %1898 = vmatpush1.bf16.xpose.msra.mxu0 0
        %1899 = vmatprep.subr.bf16.mxu0 0
        %1900 = vmatpush1.bf16.xpose.msra.mxu0 0
        %1901 = vmatprep.subr.bf16.mxu0 0
        %1902 = vmatpush1.bf16.xpose.msra.mxu0 0
        %1903 = vmatprep.subr.bf16.mxu0 0
        %1904 = vmatpush1.bf16.xpose.msra.mxu0 0
        %1905 = vmatprep.subr.bf16.mxu0 0
        %1906 = vmatpush1.bf16.xpose.msra.mxu0 0
        %1907 = vmatprep.subr.bf16.mxu0 0
        %1908 = vmatpush1.bf16.xpose.msra.mxu0 0
        %1909 = vmatprep.subr.bf16.mxu0 0
        %1910 = vmatpush1.bf16.xpose.msra.mxu0 0
        %1911 = vmatprep.subr.bf16.mxu0 0
        %1912 = vmatpush1.bf16.xpose.msra.mxu0 0
        %1913 = vmatprep.mubr.bf16.mxu0 0
        %1914 = vmatmul.mubr.bf16.gmra.mrb[0].mxu0 %v897
        %v1915 = vpop.f32.mrb[0].mxu0
        %v1916 = vadd.f32 0.0, %v1915
        %v1917 = vpop.f32.mrb[0].mxu0
        %v1918 = vpop.f32.mrb[0].mxu0
        %v1919 = vpop.f32.mrb[0].mxu0
        %1920 = vdwg.mxu0
        %1922 = vrot.lane.b32.xlu0 %v1916, 8
        %v1923 = vpop.permute.xlu0 %1922
        %v1925 = vsel %vm466, %v1873, %v1923
        %v1927 = vsel %vm473, %v1925, 0
        %1929 = vmatprep.subr.mxu0 0.0
        %1930 = vmatpush1.msra.mxu0 %v1822
        %1931 = vmatprep.subr.mxu0 0.0
        %1932 = vmatpush1.msra.mxu0 %v1823
        %1933 = vmatprep.subr.mxu0 0.0
        %1934 = vmatpush1.msra.mxu0 0.0
        %1935 = vmatprep.subr.mxu0 0.0
        %1936 = vmatpush1.msra.mxu0 0.0
        %1937 = vmatprep.subr.mxu0 0.0
        %1938 = vmatpush1.msra.mxu0 0.0
        %1939 = vmatprep.subr.mxu0 0.0
        %1940 = vmatpush1.msra.mxu0 0.0
        %1941 = vmatprep.subr.mxu0 0.0
        %1942 = vmatpush1.msra.mxu0 0.0
        %1943 = vmatprep.subr.mxu0 0.0
        %1944 = vmatpush1.msra.mxu0 0.0
        %1945 = vmatprep.subr.mxu0 0.0
        %1946 = vmatpush1.msra.mxu0 0.0
        %1947 = vmatprep.subr.mxu0 0.0
        %1948 = vmatpush1.msra.mxu0 0.0
        %1949 = vmatprep.subr.mxu0 0.0
        %1950 = vmatpush1.msra.mxu0 0.0
        %1951 = vmatprep.subr.mxu0 0.0
        %1952 = vmatpush1.msra.mxu0 0.0
        %1953 = vmatprep.subr.mxu0 0.0
        %1954 = vmatpush1.msra.mxu0 0.0
        %1955 = vmatprep.subr.mxu0 0.0
        %1956 = vmatpush1.msra.mxu0 0.0
        %1957 = vmatprep.subr.mxu0 0.0
        %1958 = vmatpush1.msra.mxu0 0.0
        %1959 = vmatprep.subr.mxu0 0.0
        %1960 = vmatpush1.msra.mxu0 0.0
        %1961 = vmatprep.subr.mxu0 0.0
        %1962 = vmatpush1.msra.mxu0 0.0
        %1963 = vmatprep.subr.mxu0 0.0
        %1964 = vmatpush1.msra.mxu0 0.0
        %1965 = vmatprep.subr.mxu0 0.0
        %1966 = vmatpush1.msra.mxu0 0.0
        %1967 = vmatprep.subr.mxu0 0.0
        %1968 = vmatpush1.msra.mxu0 0.0
        %1969 = vmatprep.subr.mxu0 0.0
        %1970 = vmatpush1.msra.mxu0 0.0
        %1971 = vmatprep.subr.mxu0 0.0
        %1972 = vmatpush1.msra.mxu0 0.0
        %1973 = vmatprep.subr.mxu0 0.0
        %1974 = vmatpush1.msra.mxu0 0.0
        %1975 = vmatprep.subr.mxu0 0.0
        %1976 = vmatpush1.msra.mxu0 0.0
        %1977 = vmatprep.subr.mxu0 0.0
        %1978 = vmatpush1.msra.mxu0 0.0
        %1979 = vmatprep.subr.mxu0 0.0
        %1980 = vmatpush1.msra.mxu0 0.0
        %1981 = vmatprep.subr.mxu0 0.0
        %1982 = vmatpush1.msra.mxu0 0.0
        %1983 = vmatprep.subr.mxu0 0.0
        %1984 = vmatpush1.msra.mxu0 0.0
        %1985 = vmatprep.subr.mxu0 0.0
        %1986 = vmatpush1.msra.mxu0 0.0
        %1987 = vmatprep.subr.mxu0 0.0
        %1988 = vmatpush1.msra.mxu0 0.0
        %1989 = vmatprep.subr.mxu0 0.0
        %1990 = vmatpush1.msra.mxu0 0.0
        %1991 = vmatprep.subr.mxu0 0.0
        %1992 = vmatpush1.msra.mxu0 0.0
        %1993 = vmatprep.mubr.f32.mxu0 0.0
        %1994 = vmatmul.mubr.f32.gmra.mrb[0].mxu0 %v1927
        %v1995 = vpop.f32.mrb[0].mxu0
        %v1996 = vadd.f32 %v950, %v1995
        %v1997 = vpop.f32.mrb[0].mxu0
        %1998 = vdwg.mxu0
        %v1999 = vmax.f32 %v1996, 0.0
        %v2000 = vmul.f32 %v1029, %v1832
        %2001 = vmatprep.subr.mxu0 0.0
        %2002 = vmatpush1.msra.mxu0 %v1999
        %2003 = vmatprep.subr.mxu0 0.0
        %2004 = vmatpush1.msra.mxu0 0.0
        %2005 = vmatprep.subr.mxu0 0.0
        %2006 = vmatpush1.msra.mxu0 0.0
        %2007 = vmatprep.subr.mxu0 0.0
        %2008 = vmatpush1.msra.mxu0 0.0
        %2009 = vmatprep.subr.mxu0 0.0
        %2010 = vmatpush1.msra.mxu0 0.0
        %2011 = vmatprep.subr.mxu0 0.0
        %2012 = vmatpush1.msra.mxu0 0.0
        %2013 = vmatprep.subr.mxu0 0.0
        %2014 = vmatpush1.msra.mxu0 0.0
        %2015 = vmatprep.subr.mxu0 0.0
        %2016 = vmatpush1.msra.mxu0 0.0
        %2017 = vmatprep.subr.mxu0 0.0
        %2018 = vmatpush1.msra.mxu0 0.0
        %2019 = vmatprep.subr.mxu0 0.0
        %2020 = vmatpush1.msra.mxu0 0.0
        %2021 = vmatprep.subr.mxu0 0.0
        %2022 = vmatpush1.msra.mxu0 0.0
        %2023 = vmatprep.subr.mxu0 0.0
        %2024 = vmatpush1.msra.mxu0 0.0
        %2025 = vmatprep.subr.mxu0 0.0
        %2026 = vmatpush1.msra.mxu0 0.0
        %2027 = vmatprep.subr.mxu0 0.0
        %2028 = vmatpush1.msra.mxu0 0.0
        %2029 = vmatprep.subr.mxu0 0.0
        %2030 = vmatpush1.msra.mxu0 0.0
        %2031 = vmatprep.subr.mxu0 0.0
        %2032 = vmatpush1.msra.mxu0 0.0
        %2033 = vmatprep.subr.mxu0 0.0
        %2034 = vmatpush1.msra.mxu0 0.0
        %2035 = vmatprep.subr.mxu0 0.0
        %2036 = vmatpush1.msra.mxu0 0.0
        %2037 = vmatprep.subr.mxu0 0.0
        %2038 = vmatpush1.msra.mxu0 0.0
        %2039 = vmatprep.subr.mxu0 0.0
        %2040 = vmatpush1.msra.mxu0 0.0
        %2041 = vmatprep.subr.mxu0 0.0
        %2042 = vmatpush1.msra.mxu0 0.0
        %2043 = vmatprep.subr.mxu0 0.0
        %2044 = vmatpush1.msra.mxu0 0.0
        %2045 = vmatprep.subr.mxu0 0.0
        %2046 = vmatpush1.msra.mxu0 0.0
        %2047 = vmatprep.subr.mxu0 0.0
        %2048 = vmatpush1.msra.mxu0 0.0
        %2049 = vmatprep.subr.mxu0 0.0
        %2050 = vmatpush1.msra.mxu0 0.0
        %2051 = vmatprep.subr.mxu0 0.0
        %2052 = vmatpush1.msra.mxu0 0.0
        %2053 = vmatprep.subr.mxu0 0.0
        %2054 = vmatpush1.msra.mxu0 0.0
        %2055 = vmatprep.subr.mxu0 0.0
        %2056 = vmatpush1.msra.mxu0 0.0
        %2057 = vmatprep.subr.mxu0 0.0
        %2058 = vmatpush1.msra.mxu0 0.0
        %2059 = vmatprep.subr.mxu0 0.0
        %2060 = vmatpush1.msra.mxu0 0.0
        %2061 = vmatprep.subr.mxu0 0.0
        %2062 = vmatpush1.msra.mxu0 0.0
        %2063 = vmatprep.subr.mxu0 0.0
        %2064 = vmatpush1.msra.mxu0 0.0
        %2065 = vmatprep.mubr.f32.mxu0 0.0
        %2066 = vmatmul.mubr.f32.gmra.mrb[0].mxu0 %v1033
        %v2067 = vpop.f32.mrb[0].mxu0
        %v2068 = vadd.f32 0.0, %v2067
        %v2069 = vpop.f32.mrb[0].mxu0
        %2070 = vdwg.mxu0
        %v2071 = vadd.f32 %v2000, %v2068
        %v2072 = vadd.f32 %v2071, %v1109
        %v2073 = vmax.f32 %v2072, 0.0
        %2074 = vxpose.xlu0.b32.start [1/16] %v2073, 128
        %2075 = vxpose.xlu0.b32.cont [2/16] 0.0, 128
        %2076 = vxpose.xlu0.b32.cont [3/16] 0.0, 128
        %2077 = vxpose.xlu0.b32.cont [4/16] 0.0, 128
        %2078 = vxpose.xlu0.b32.cont [5/16] 0.0, 128
        %2079 = vxpose.xlu0.b32.cont [6/16] 0.0, 128
        %2080 = vxpose.xlu0.b32.cont [7/16] 0.0, 128
        %2081 = vxpose.xlu0.b32.cont [8/16] 0.0, 128
        %2082 = vxpose.xlu0.b32.cont [9/16] 0.0, 128
        %2083 = vxpose.xlu0.b32.cont [10/16] 0.0, 128
        %2084 = vxpose.xlu0.b32.cont [11/16] 0.0, 128
        %2085 = vxpose.xlu0.b32.cont [12/16] 0.0, 128
        %2086 = vxpose.xlu0.b32.cont [13/16] 0.0, 128
        %2087 = vxpose.xlu0.b32.cont [14/16] 0.0, 128
        %2088 = vxpose.xlu0.b32.cont [15/16] 0.0, 128
        %2089 = vxpose.xlu0.b32.end [16/16] 0.0, 128
        %v2090 = vpop.trf.xlu0
        %v2091 = vpop.trf.xlu0
        %v2092 = vpop.trf.xlu0
        %v2093 = vpop.trf.xlu0
        %v2094 = vpop.trf.xlu0
        %v2095 = vpop.trf.xlu0
        %v2096 = vpop.trf.xlu0
        %v2097 = vpop.trf.xlu0
        %v2098 = vpop.trf.xlu0
        %v2099 = vpop.trf.xlu0
        %v2100 = vpop.trf.xlu0
        %v2101 = vpop.trf.xlu0
        %v2102 = vpop.trf.xlu0
        %v2103 = vpop.trf.xlu0
        %v2104 = vpop.trf.xlu0
        %v2105 = vpop.trf.xlu0
        %v2107 = vsel %vm640, %v2090, 0
        %v2110 = vsel %vm640, %v2091, 0
        %v2113 = vsel %vm640, %v2092, 0
        %v2116 = vsel %vm640, %v2093, 0
        %v2119 = vsel %vm640, %v2094, 0
        %v2122 = vsel %vm640, %v2095, 0
        %v2125 = vsel %vm640, %v2096, 0
        %v2128 = vsel %vm640, %v2097, 0
        %2130 = vmatprep.subr.mxu0 0.0
        %2131 = vmatpush1.xpose.msra.mxu0 %v1174
        %2132 = vmatprep.subr.mxu0 0.0
        %2133 = vmatpush1.xpose.msra.mxu0 0.0
        %2134 = vmatprep.subr.mxu0 0.0
        %2135 = vmatpush1.xpose.msra.mxu0 0.0
        %2136 = vmatprep.subr.mxu0 0.0
        %2137 = vmatpush1.xpose.msra.mxu0 0.0
        %2138 = vmatprep.subr.mxu0 0.0
        %2139 = vmatpush1.xpose.msra.mxu0 0.0
        %2140 = vmatprep.subr.mxu0 0.0
        %2141 = vmatpush1.xpose.msra.mxu0 0.0
        %2142 = vmatprep.subr.mxu0 0.0
        %2143 = vmatpush1.xpose.msra.mxu0 0.0
        %2144 = vmatprep.subr.mxu0 0.0
        %2145 = vmatpush1.xpose.msra.mxu0 0.0
        %2146 = vmatprep.subr.mxu0 0.0
        %2147 = vmatpush1.xpose.msra.mxu0 0.0
        %2148 = vmatprep.subr.mxu0 0.0
        %2149 = vmatpush1.xpose.msra.mxu0 0.0
        %2150 = vmatprep.subr.mxu0 0.0
        %2151 = vmatpush1.xpose.msra.mxu0 0.0
        %2152 = vmatprep.subr.mxu0 0.0
        %2153 = vmatpush1.xpose.msra.mxu0 0.0
        %2154 = vmatprep.subr.mxu0 0.0
        %2155 = vmatpush1.xpose.msra.mxu0 0.0
        %2156 = vmatprep.subr.mxu0 0.0
        %2157 = vmatpush1.xpose.msra.mxu0 0.0
        %2158 = vmatprep.subr.mxu0 0.0
        %2159 = vmatpush1.xpose.msra.mxu0 0.0
        %2160 = vmatprep.subr.mxu0 0.0
        %2161 = vmatpush1.xpose.msra.mxu0 0.0
        %2162 = vmatprep.subr.mxu0 0.0
        %2163 = vmatpush1.xpose.msra.mxu0 0.0
        %2164 = vmatprep.subr.mxu0 0.0
        %2165 = vmatpush1.xpose.msra.mxu0 0.0
        %2166 = vmatprep.subr.mxu0 0.0
        %2167 = vmatpush1.xpose.msra.mxu0 0.0
        %2168 = vmatprep.subr.mxu0 0.0
        %2169 = vmatpush1.xpose.msra.mxu0 0.0
        %2170 = vmatprep.subr.mxu0 0.0
        %2171 = vmatpush1.xpose.msra.mxu0 0.0
        %2172 = vmatprep.subr.mxu0 0.0
        %2173 = vmatpush1.xpose.msra.mxu0 0.0
        %2174 = vmatprep.subr.mxu0 0.0
        %2175 = vmatpush1.xpose.msra.mxu0 0.0
        %2176 = vmatprep.subr.mxu0 0.0
        %2177 = vmatpush1.xpose.msra.mxu0 0.0
        %2178 = vmatprep.subr.mxu0 0.0
        %2179 = vmatpush1.xpose.msra.mxu0 0.0
        %2180 = vmatprep.subr.mxu0 0.0
        %2181 = vmatpush1.xpose.msra.mxu0 0.0
        %2182 = vmatprep.subr.mxu0 0.0
        %2183 = vmatpush1.xpose.msra.mxu0 0.0
        %2184 = vmatprep.subr.mxu0 0.0
        %2185 = vmatpush1.xpose.msra.mxu0 0.0
        %2186 = vmatprep.subr.mxu0 0.0
        %2187 = vmatpush1.xpose.msra.mxu0 0.0
        %2188 = vmatprep.subr.mxu0 0.0
        %2189 = vmatpush1.xpose.msra.mxu0 0.0
        %2190 = vmatprep.subr.mxu0 0.0
        %2191 = vmatpush1.xpose.msra.mxu0 0.0
        %2192 = vmatprep.subr.mxu0 0.0
        %2193 = vmatpush1.xpose.msra.mxu0 0.0
        %2194 = vmatprep.mubr.f32.mxu0 0.0
        %2195 = vmatmul.mubr.f32.gmra.mrb[0].mxu0 %v2107
        %v2196 = vpop.f32.mrb[0].mxu0
        %v2197 = vadd.f32 %v1116, %v2196
        %v2198 = vpop.f32.mrb[0].mxu0
        %2199 = vmatprep.mubr.f32.mxu0 0.0
        %2200 = vmatmul.mubr.f32.gmra.mrb[0].mxu0 %v2110
        %v2201 = vpop.f32.mrb[0].mxu0
        %v2202 = vadd.f32 %v1116, %v2201
        %v2203 = vpop.f32.mrb[0].mxu0
        %2204 = vmatprep.mubr.f32.mxu0 0.0
        %2205 = vmatmul.mubr.f32.gmra.mrb[0].mxu0 %v2113
        %v2206 = vpop.f32.mrb[0].mxu0
        %v2207 = vadd.f32 %v1116, %v2206
        %v2208 = vpop.f32.mrb[0].mxu0
        %2209 = vmatprep.mubr.f32.mxu0 0.0
        %2210 = vmatmul.mubr.f32.gmra.mrb[0].mxu0 %v2116
        %v2211 = vpop.f32.mrb[0].mxu0
        %v2212 = vadd.f32 %v1116, %v2211
        %v2213 = vpop.f32.mrb[0].mxu0
        %2214 = vmatprep.mubr.f32.mxu0 0.0
        %2215 = vmatmul.mubr.f32.gmra.mrb[0].mxu0 %v2119
        %v2216 = vpop.f32.mrb[0].mxu0
        %v2217 = vadd.f32 %v1116, %v2216
        %v2218 = vpop.f32.mrb[0].mxu0
        %2219 = vmatprep.mubr.f32.mxu0 0.0
        %2220 = vmatmul.mubr.f32.gmra.mrb[0].mxu0 %v2122
        %v2221 = vpop.f32.mrb[0].mxu0
        %v2222 = vadd.f32 %v1116, %v2221
        %v2223 = vpop.f32.mrb[0].mxu0
        %2224 = vmatprep.mubr.f32.mxu0 0.0
        %2225 = vmatmul.mubr.f32.gmra.mrb[0].mxu0 %v2125
        %v2226 = vpop.f32.mrb[0].mxu0
        %v2227 = vadd.f32 %v1116, %v2226
        %v2228 = vpop.f32.mrb[0].mxu0
        %2229 = vmatprep.mubr.f32.mxu0 0.0
        %2230 = vmatmul.mubr.f32.gmra.mrb[0].mxu0 %v2128
        %v2231 = vpop.f32.mrb[0].mxu0
        %v2232 = vadd.f32 %v1116, %v2231
        %v2233 = vpop.f32.mrb[0].mxu0
        %2234 = vdwg.mxu0
        %v2235 = vxor.u32 %v2197, 2147483648
        %v2236 = vxor.u32 %v2202, 2147483648
        %v2237 = vxor.u32 %v2207, 2147483648
        %v2238 = vxor.u32 %v2212, 2147483648
        %v2239 = vxor.u32 %v2217, 2147483648
        %v2240 = vxor.u32 %v2222, 2147483648
        %v2241 = vxor.u32 %v2227, 2147483648
        %v2242 = vxor.u32 %v2232, 2147483648
        %v2243 = vmul.f32 %v2235, 1.442695
        %v2244 = vpow.pop %v2243
        %v2245 = vmul.f32 %v2236, 1.442695
        %v2246 = vpow.pop %v2245
        %v2247 = vmul.f32 %v2237, 1.442695
        %v2248 = vpow.pop %v2247
        %v2249 = vmul.f32 %v2238, 1.442695
        %v2250 = vpow.pop %v2249
        %v2251 = vmul.f32 %v2239, 1.442695
        %v2252 = vpow.pop %v2251
        %v2253 = vmul.f32 %v2240, 1.442695
        %v2254 = vpow.pop %v2253
        %v2255 = vmul.f32 %v2241, 1.442695
        %v2256 = vpow.pop %v2255
        %v2257 = vmul.f32 %v2242, 1.442695
        %v2258 = vpow.pop %v2257
        %v2259 = vadd.f32 %v2244, 1.0
        %v2260 = vadd.f32 %v2246, 1.0
        %v2261 = vadd.f32 %v2248, 1.0
        %v2262 = vadd.f32 %v2250, 1.0
        %v2263 = vadd.f32 %v2252, 1.0
        %v2264 = vadd.f32 %v2254, 1.0
        %v2265 = vadd.f32 %v2256, 1.0
        %v2266 = vadd.f32 %v2258, 1.0
        %v2267 = vrcp.pop %v2259
        %v2268 = vmul.f32 1.0, %v2267
        %v2269 = vrcp.pop %v2260
        %v2270 = vmul.f32 1.0, %v2269
        %v2271 = vrcp.pop %v2261
        %v2272 = vmul.f32 1.0, %v2271
        %v2273 = vrcp.pop %v2262
        %v2274 = vmul.f32 1.0, %v2273
        %v2275 = vrcp.pop %v2263
        %v2276 = vmul.f32 1.0, %v2275
        %v2277 = vrcp.pop %v2264
        %v2278 = vmul.f32 1.0, %v2277
        %v2279 = vrcp.pop %v2265
        %v2280 = vmul.f32 1.0, %v2279
        %v2281 = vrcp.pop %v2266
        %v2282 = vmul.f32 1.0, %v2281
        %2284 = vset.pattern.permute.xlu0 0
        %2285 = vperm.xlu0 %2284, %v2268
        %v2286 = vpop.permute.xlu0 %2285
        %2289 = vset.pattern.permute.xlu0 0
        %2290 = vperm.xlu0 %2289, %v2270
        %v2291 = vpop.permute.xlu0 %2290
        %2294 = vset.pattern.permute.xlu0 0
        %2295 = vperm.xlu0 %2294, %v2272
        %v2296 = vpop.permute.xlu0 %2295
        %2299 = vset.pattern.permute.xlu0 0
        %2300 = vperm.xlu0 %2299, %v2274
        %v2301 = vpop.permute.xlu0 %2300
        %2304 = vset.pattern.permute.xlu0 0
        %2305 = vperm.xlu0 %2304, %v2276
        %v2306 = vpop.permute.xlu0 %2305
        %2309 = vset.pattern.permute.xlu0 0
        %2310 = vperm.xlu0 %2309, %v2278
        %v2311 = vpop.permute.xlu0 %2310
        %2314 = vset.pattern.permute.xlu0 0
        %2315 = vperm.xlu0 %2314, %v2280
        %v2316 = vpop.permute.xlu0 %2315
        %2319 = vset.pattern.permute.xlu0 0
        %2320 = vperm.xlu0 %2319, %v2282
        %v2321 = vpop.permute.xlu0 %2320
        %v2323 = vmul.f32 %v2286, %v1750
        %v2324 = vmul.f32 %v2291, %v1751
        %v2325 = vmul.f32 %v2296, %v1752
        %v2326 = vmul.f32 %v2301, %v1753
        %v2327 = vmul.f32 %v2306, %v1754
        %v2328 = vmul.f32 %v2311, %v1755
        %v2329 = vmul.f32 %v2316, %v1756
        %v2330 = vmul.f32 %v2321, %v1757
        %2339 = vrot.lane.b32.xlu0 %v2323, 64
        %v2340 = vpop.permute.xlu0 %2339
        %2341 = vrot.lane.b32.xlu0 %v2324, 64
        %v2342 = vpop.permute.xlu0 %2341
        %2343 = vrot.lane.b32.xlu0 %v2325, 64
        %v2344 = vpop.permute.xlu0 %2343
        %2345 = vrot.lane.b32.xlu0 %v2326, 64
        %v2346 = vpop.permute.xlu0 %2345
        %2347 = vrot.lane.b32.xlu0 %v2327, 64
        %v2348 = vpop.permute.xlu0 %2347
        %2349 = vrot.lane.b32.xlu0 %v2328, 64
        %v2350 = vpop.permute.xlu0 %2349
        %2351 = vrot.lane.b32.xlu0 %v2329, 64
        %v2352 = vpop.permute.xlu0 %2351
        %2353 = vrot.lane.b32.xlu0 %v2330, 64
        %v2354 = vpop.permute.xlu0 %2353
        %v2363 = vsel %vm302, %v1369, %v2340
        %v2364 = vsel %vm302, %v1370, %v2342
        %v2365 = vsel %vm302, %v1371, %v2344
        %v2366 = vsel %vm302, %v1372, %v2346
        %v2367 = vsel %vm302, %v1373, %v2348
        %v2368 = vsel %vm302, %v1374, %v2350
        %v2369 = vsel %vm302, %v1375, %v2352
        %v2370 = vsel %vm302, %v1376, %v2354
        %2371 = vst [vmem:[%s217] sm:$0xff] %v2363
        %2372 = vst [vmem:[%s217 + $0x8] sm:$0xff] %v2364
        %2373 = vst [vmem:[%s217 + $0x10] sm:$0xff] %v2365
        %2374 = vst [vmem:[%s217 + $0x18] sm:$0xff] %v2366
        %2375 = vst [vmem:[%s217 + $0x20] sm:$0xff] %v2367
        %2376 = vst [vmem:[%s217 + $0x28] sm:$0xff] %v2368
        %2377 = vst [vmem:[%s217 + $0x30] sm:$0xff] %v2369
        %2378 = vst [vmem:[%s217 + $0x38] sm:$0xff] %v2370
        %s2379 = sand.u32 %s97, 1
        %s2380 = scalar_lea.sflag [#allocation4], %s2379
        %s2381 = sand.u32 %s97, 1
        %s2382 = smul.addr %s2381, 64
        %s2383 = scalar_lea.vmem [#allocation8], %s2382
        // Predicated region
        $region45: #{rga_pallas.1} parent=31 // pred_check
          %p2384 = pneg %p107
        $region46: #{rga_pallas.1} parent=31 // pred_check_branch
          %2386 = sbr.rel (%p2384) target = $region48
        $region47: #{rga_pallas.1} parent=31 // pred_region
          %s2388 = ssub.s32 1024, 1024
          %2389 = vsyncadd %s2380, %s2388
          %s2390 = smul.addr %s21, 8
          %s2391 = smul.addr %s2390, 128
          %s2392 = scalar_lea.hbm %s3, %s2391
          %s2393 = sshll.u32 %s2383, 4
          %s2394 = int_to_ptr.vmem [resolvable:$true] %s2393
          %2399 = dma.vmem_to_hbm [thread:$0]  %s2394, 1024, %s2392, %s2380, 128, 128, 8
        $region48: #{rga_pallas.1} parent=31 // pred_fallthru
          _
      $region32: #{rga_pallas.1} parent=5 // pred_fallthru
        _
      %p2400 = scmp.le.s32.totalorder 2, %s16
      // Predicated region
      $region49: #{rga_pallas.1} parent=5 // pred_check
        %p2401 = pneg %p2400
      $region50: #{rga_pallas.1} parent=5 // pred_check_branch
        %2403 = sbr.rel (%p2401) target = $region52
      $region51: #{rga_pallas.1} parent=5 // pred_region
        %s2404 = ssub.s32 %s16, 2
        // Predicated region
        $region53: #{rga_pallas.1} parent=51 // pred_check
          %p2405 = pneg %p113
        $region54: #{rga_pallas.1} parent=51 // pred_check_branch
          %2407 = sbr.rel (%p2405) target = $region56
        $region55: #{rga_pallas.1} parent=51 // pred_region
          %s2408 = sand.u32 %s98, 1
          %s2409 = scalar_lea.sflag [#allocation4], %s2408
          %s2410 = sand.u32 %s98, 1
          %s2411 = smul.addr %s2410, 64
          %s2412 = scalar_lea.vmem [#allocation8], %s2411
          %2413 = dma.done %s2409, 1024
        $region56: #{rga_pallas.1} parent=51 // pred_fallthru
          _
      $region52: #{rga_pallas.1} parent=5 // pred_fallthru
        _
    $region6: #{rga_pallas.1} parent=1 // loop_footer
      %s20 = sadd.s32 1, %s16
    $region7: #{rga_pallas.1} parent=1 // loop_footer_branch
      %15 = sbr.rel target = $region3
    $region8: #{rga_pallas.1} parent=1 // loop_exit
      _
    %2414 = vsyncpa [#allocation3], 1
    %s2415 = scalar_lea.sflag [#allocation3], 1
    %2416 = vsyncpa %s2415, 1
    %2417 = vsyncpa [#allocation6], 1
    %2418 = vsyncpa [#allocation4], 1
    %s2419 = scalar_lea.sflag [#allocation4], 1
    %2420 = vsyncpa %s2419, 1

</llo_original>
